<compile_context>
chip_gen: v7x
topology: tpu7x:2x2x1
jax: 0.10.0
libtpu: 0.0.40
codegen_flags: <defaults>
</compile_context>

<pallas_src>
import functools

import jax
import jax.numpy as jnp
import numpy as np
from jax.experimental import pallas as pl
from jax.experimental.pallas import tpu as pltpu


def _round_up(v, m):
    return ((v + m - 1) // m) * m


def _pick_batch_tile(batch, seq, target_rows=512):
    """Largest divisor of `batch` whose tile has at most ~target_rows rows."""
    bt = 1
    for d in range(1, batch + 1):
        if batch % d == 0 and d * seq <= target_rows:
            bt = d
    return bt


# ----------------------------- Pallas kernel ------------------------------ #
def textblock_kernel(x_ref, ln1_g_ref, ln1_b_ref, wqkv_ref, bqkv_ref,
                     wo_ref, bo_ref, ln2_g_ref, ln2_b_ref,
                     wfc_ref, bfc_ref, wpr_ref, bpr_ref, o_ref,
                     *, num_heads, c_real, eps):
    bt, n, cp = x_ref.shape            # (batch-tile, seq, padded channels)
    m = bt * n
    dh = c_real // num_heads
    inv_c = 1.0 / c_real

    x = x_ref[...].reshape(m, cp)      # f32; padded lanes are zero

    # ---- LayerNorm 1 (single data pass; divisor = real C) ----
    mu = jnp.sum(x, axis=-1, keepdims=True) * inv_c
    ex2 = jnp.sum(x * x, axis=-1, keepdims=True) * inv_c
    h = (x - mu) * jax.lax.rsqrt(ex2 - mu * mu + eps) * ln1_g_ref[0] + ln1_b_ref[0]

    # ---- fused QKV projection (attention scale pre-folded into Q) ----
    # Output layout: [Q | K | V], each block padded to cp lanes -> lane-dense.
    qkv = jnp.dot(h.astype(jnp.bfloat16), wqkv_ref[...],
                  preferred_element_type=jnp.float32) + bqkv_ref[0]   # (m, 3*cp)
    qkv_b = qkv.astype(jnp.bfloat16)   # cast once; head slices feed the MXU

    # ---- multi-head attention: static head loop, batched over Bt sequences,
    #      per-head result folded directly into the output projection ----
    y = jnp.zeros((m, cp), jnp.float32)
    for hh in range(num_heads):
        lo = hh * dh
        q = qkv_b[:, lo:lo + dh].reshape(bt, n, dh)
        k = qkv_b[:, cp + lo:cp + lo + dh].reshape(bt, n, dh)
        v = qkv_b[:, 2 * cp + lo:2 * cp + lo + dh].reshape(bt, n, dh)

        s = jnp.einsum('bnd,bmd->bnm', q, k,
                       preferred_element_type=jnp.float32)            # (bt, n, n)
        s = s - jnp.max(s, axis=-1, keepdims=True)
        p = jnp.exp(s)
        p = p * pl.reciprocal(jnp.sum(p, axis=-1, keepdims=True), approx=True)

        o_h = jnp.einsum('bnm,bmd->bnd', p.astype(jnp.bfloat16), v,
                         preferred_element_type=jnp.float32)          # (bt, n, dh)
        y = y + jnp.dot(o_h.reshape(m, dh).astype(jnp.bfloat16),
                        wo_ref[hh],                                   # (dh, cp)
                        preferred_element_type=jnp.float32)

    x1 = x + y + bo_ref[0]             # first residual (padded lanes stay 0)

    # ---- LayerNorm 2 ----
    mu2 = jnp.sum(x1, axis=-1, keepdims=True) * inv_c
    ex22 = jnp.sum(x1 * x1, axis=-1, keepdims=True) * inv_c
    h2 = (x1 - mu2) * jax.lax.rsqrt(ex22 - mu2 * mu2 + eps) * ln2_g_ref[0] + ln2_b_ref[0]

    # ---- MLP: c_fc -> QuickGELU -> c_proj ----
    f = jnp.dot(h2.astype(jnp.bfloat16), wfc_ref[...],
                preferred_element_type=jnp.float32) + bfc_ref[0]
    f = f * jax.nn.sigmoid(1.702 * f)                  # QuickGELU (f32 VPU/EUP)
    mo = jnp.dot(f.astype(jnp.bfloat16), wpr_ref[...],
                 preferred_element_type=jnp.float32) + bpr_ref[0]

    o_ref[...] = (x1 + mo).reshape(bt, n, cp)          # second residual


# ------------------------------- wrapper ----------------------------------- #
def textblock_forward(x, torch_params, num_heads):
    """x: (B, N, C) f32.  torch_params: weights in PyTorch layout (see main)."""
    (ln1_g, ln1_b, in_w, in_b, out_w, out_b,
     ln2_g, ln2_b, fc_w, fc_b, pr_w, pr_b) = torch_params

    B, N, C = x.shape
    dh = C // num_heads
    scale = dh ** -0.5
    Cp = _round_up(C, 128)             # lane-dense channel dim
    Hp = _round_up(4 * C, 128)         # lane-dense MLP hidden dim

    def pad2(a, rows, cols):
        r, c = a.shape
        return jnp.pad(a, ((0, rows - r), (0, cols - c)))

    def pad1(a, cols):
        return jnp.pad(a, (0, cols - a.shape[0])).reshape(1, cols)

    # Pre-transpose to x @ W form; fold the attention scale into the Q block.
    wqkv = in_w.T                                   # (C, 3C), cols = [Q|K|V]
    wqkv = wqkv.at[:, :C].multiply(scale)
    bqkv = in_b.at[:C].multiply(scale)

    # Pad each of the Q/K/V blocks to Cp lanes -> QKV matmul output is (m, 3*Cp).
    wqkv_p = pad2(wqkv.reshape(C, 3, C).transpose(1, 0, 2).reshape(3 * C, C).T
                  if False else wqkv, Cp, 3 * C)    # placeholder, replaced below
    wqkv_p = jnp.pad(wqkv.reshape(C, 3, C),
                     ((0, Cp - C), (0, 0), (0, Cp - C))).reshape(Cp, 3 * Cp)
    wqkv_p = wqkv_p.astype(jnp.bfloat16)
    bqkv_p = jnp.pad(bqkv.reshape(3, C), ((0, 0), (0, Cp - C))).reshape(1, 3 * Cp)

    # Out-proj weight: (C, Cp) padded, then viewed as (H, dh, Cp) so the kernel
    # indexes a whole per-head slab via the leading axis (no sublane slicing).
    wo_p = pad2(out_w.T, C, Cp).reshape(num_heads, dh, Cp).astype(jnp.bfloat16)
    bo_p = pad1(out_b, Cp)
    wfc_p = pad2(fc_w.T, Cp, Hp).astype(jnp.bfloat16)
    bfc_p = pad1(fc_b, Hp)
    wpr_p = pad2(pr_w.T, Hp, Cp).astype(jnp.bfloat16)
    bpr_p = pad1(pr_b, Cp)
    ln1_g_p, ln1_b_p = pad1(ln1_g, Cp), pad1(ln1_b, Cp)
    ln2_g_p, ln2_b_p = pad1(ln2_g, Cp), pad1(ln2_b, Cp)

    x_p = jnp.pad(x, ((0, 0), (0, 0), (0, Cp - C)))

    Bt = _pick_batch_tile(B, N)        # Bt*N rows of M per grid step
    kernel = functools.partial(textblock_kernel, num_heads=num_heads,
                               c_real=C, eps=1e-5)

    def w2(shape):
        return pl.BlockSpec(shape, lambda i: (0,) * len(shape))

    in_specs = [
        pl.BlockSpec((Bt, N, Cp), lambda i: (i, 0, 0)),   # x
        w2((1, Cp)), w2((1, Cp)),                         # ln1 gamma/beta
        w2((Cp, 3 * Cp)), w2((1, 3 * Cp)),                # qkv W^T (scaled), b
        w2((num_heads, dh, Cp)), w2((1, Cp)),             # out_proj W^T, b
        w2((1, Cp)), w2((1, Cp)),                         # ln2 gamma/beta
        w2((Cp, Hp)), w2((1, Hp)),                        # c_fc W^T, b
        w2((Hp, Cp)), w2((1, Cp)),                        # c_proj W^T, b
    ]
    out_spec = pl.BlockSpec((Bt, N, Cp), lambda i: (i, 0, 0))

    out = pl.pallas_call(
        kernel,
        out_shape=jax.ShapeDtypeStruct((B, N, Cp), x.dtype),
        grid=(B // Bt,),
        in_specs=in_specs,
        out_specs=out_spec,
        compiler_params=pltpu.CompilerParams(
            dimension_semantics=("parallel",),
            vmem_limit_bytes=32 * 1024 * 1024),
    )(x_p, ln1_g_p, ln1_b_p, wqkv_p, bqkv_p, wo_p, bo_p,
      ln2_g_p, ln2_b_p, wfc_p, bfc_p, wpr_p, bpr_p)

    return out[..., :C]                # drop channel padding


# --------------------------- pure-JAX reference ----------------------------- #
def _ln(x, g, b, eps=1e-5):
    mu = x.mean(-1, keepdims=True)
    var = ((x - mu) ** 2).mean(-1, keepdims=True)
    return (x - mu) / jnp.sqrt(var + eps) * g + b


def textblock_ref(x, torch_params, num_heads):
    (ln1_g, ln1_b, in_w, in_b, out_w, out_b,
     ln2_g, ln2_b, fc_w, fc_b, pr_w, pr_b) = torch_params
    B, N, C = x.shape
    dh = C // num_heads
    scale = dh ** -0.5

    h = _ln(x, ln1_g, ln1_b)
    qkv = h @ in_w.T + in_b
    q, k, v = qkv[..., :C], qkv[..., C:2 * C], qkv[..., 2 * C:]
    q = q.reshape(B, N, num_heads, dh).transpose(0, 2, 1, 3)
    k = k.reshape(B, N, num_heads, dh).transpose(0, 2, 1, 3)
    v = v.reshape(B, N, num_heads, dh).transpose(0, 2, 1, 3)
    attn = jax.nn.softmax((q @ k.transpose(0, 1, 3, 2)) * scale, axis=-1)
    o = (attn @ v).transpose(0, 2, 1, 3).reshape(B, N, C)
    x1 = x + (o @ out_w.T + out_b)

    h2 = _ln(x1, ln2_g, ln2_b)
    f = h2 @ fc_w.T + fc_b
    f = f * jax.nn.sigmoid(1.702 * f)
    return x1 + (f @ pr_w.T + pr_b)


# --------------------------------- main ------------------------------------ #
if __name__ == "__main__":
    B, N, C, H = 2, 8, 32, 4           # batch, seq, d_model, n_head

    key = jax.random.PRNGKey(0)
    keys = jax.random.split(key, 16)

    # Parameters in the original PyTorch shapes.
    in_proj_w = 0.05 * jax.random.normal(keys[0], (3 * C, C), jnp.float32)
    in_proj_b = 0.05 * jax.random.normal(keys[1], (3 * C,), jnp.float32)
    out_proj_w = 0.05 * jax.random.normal(keys[2], (C, C), jnp.float32)
    out_proj_b = 0.05 * jax.random.normal(keys[3], (C,), jnp.float32)
    c_fc_w = 0.05 * jax.random.normal(keys[4], (4 * C, C), jnp.float32)
    c_fc_b = 0.05 * jax.random.normal(keys[5], (4 * C,), jnp.float32)
    c_proj_w = 0.05 * jax.random.normal(keys[6], (C, 4 * C), jnp.float32)
    c_proj_b = 0.05 * jax.random.normal(keys[7], (C,), jnp.float32)
    ln1_g = 1.0 + 0.05 * jax.random.normal(keys[8], (C,), jnp.float32)
    ln1_b = 0.05 * jax.random.normal(keys[9], (C,), jnp.float32)
    ln2_g = 1.0 + 0.05 * jax.random.normal(keys[10], (C,), jnp.float32)
    ln2_b = 0.05 * jax.random.normal(keys[11], (C,), jnp.float32)

    torch_params = (ln1_g, ln1_b, in_proj_w, in_proj_b, out_proj_w, out_proj_b,
                    ln2_g, ln2_b, c_fc_w, c_fc_b, c_proj_w, c_proj_b)

    x = jax.random.normal(keys[12], (B, N, C), jnp.float32)

    out = textblock_forward(x, torch_params, num_heads=H)
    out = jax.block_until_ready(out)

    ref = textblock_ref(x, torch_params, num_heads=H)
    # bf16 MXU operands + approx reciprocal => slightly looser tolerance (f32 reference).
    np.testing.assert_allclose(np.asarray(out), np.asarray(ref),
                               rtol=2e-2, atol=2e-2)

    print("KERNEL_OK")
</pallas_src>

<mosaic_0001>
module attributes {stable_mosaic.version = 11 : i64} {
  func.func @textblock_kernel(%arg0: i32, %arg1: memref<2x8x128xf32, #tpu.memory_space<vmem>>, %arg2: memref<1x128xf32, #tpu.memory_space<vmem>>, %arg3: memref<1x128xf32, #tpu.memory_space<vmem>>, %arg4: memref<128x384xbf16, #tpu.memory_space<vmem>>, %arg5: memref<1x384xf32, #tpu.memory_space<vmem>>, %arg6: memref<4x8x128xbf16, #tpu.memory_space<vmem>>, %arg7: memref<1x128xf32, #tpu.memory_space<vmem>>, %arg8: memref<1x128xf32, #tpu.memory_space<vmem>>, %arg9: memref<1x128xf32, #tpu.memory_space<vmem>>, %arg10: memref<128x128xbf16, #tpu.memory_space<vmem>>, %arg11: memref<1x128xf32, #tpu.memory_space<vmem>>, %arg12: memref<128x128xbf16, #tpu.memory_space<vmem>>, %arg13: memref<1x128xf32, #tpu.memory_space<vmem>>, %arg14: memref<2x8x128xf32, #tpu.memory_space<vmem>>) attributes {dimension_semantics = [#tpu.dimension_semantics<parallel>], iteration_bounds = array<i64: 1>, scalar_prefetch = 0 : i64, scratch_operands = 0 : i64, tpu.core_type = #tpu.core_type<tc>, window_params = [{transform_indices = @transform_0, window_bounds = array<i64: 2, 8, 128>}, {pipeline_mode = #tpu.pipeline_mode<synchronous>, transform_indices = @transform_1, window_bounds = array<i64: 1, 128>}, {pipeline_mode = #tpu.pipeline_mode<synchronous>, transform_indices = @transform_2, window_bounds = array<i64: 1, 128>}, {pipeline_mode = #tpu.pipeline_mode<synchronous>, transform_indices = @transform_3, window_bounds = array<i64: 128, 384>}, {pipeline_mode = #tpu.pipeline_mode<synchronous>, transform_indices = @transform_4, window_bounds = array<i64: 1, 384>}, {pipeline_mode = #tpu.pipeline_mode<synchronous>, transform_indices = @transform_5, window_bounds = array<i64: 4, 8, 128>}, {pipeline_mode = #tpu.pipeline_mode<synchronous>, transform_indices = @transform_6, window_bounds = array<i64: 1, 128>}, {pipeline_mode = #tpu.pipeline_mode<synchronous>, transform_indices = @transform_7, window_bounds = array<i64: 1, 128>}, {pipeline_mode = #tpu.pipeline_mode<synchronous>, transform_indices = @transform_8, window_bounds = array<i64: 1, 128>}, {pipeline_mode = #tpu.pipeline_mode<synchronous>, transform_indices = @transform_9, window_bounds = array<i64: 128, 128>}, {pipeline_mode = #tpu.pipeline_mode<synchronous>, transform_indices = @transform_10, window_bounds = array<i64: 1, 128>}, {pipeline_mode = #tpu.pipeline_mode<synchronous>, transform_indices = @transform_11, window_bounds = array<i64: 128, 128>}, {pipeline_mode = #tpu.pipeline_mode<synchronous>, transform_indices = @transform_12, window_bounds = array<i64: 1, 128>}, {transform_indices = @transform_13, window_bounds = array<i64: 2, 8, 128>}]} {
    %c0 = arith.constant 0 : index
    %c0_0 = arith.constant 0 : index
    %c0_1 = arith.constant 0 : index
    %0 = vector.load %arg1[%c0, %c0_0, %c0_1] : memref<2x8x128xf32, #tpu.memory_space<vmem>>, vector<2x8x128xf32>
    %1 = vector.shape_cast %0 : vector<2x8x128xf32> to vector<16x128xf32>
    %cst = arith.constant dense<0.000000e+00> : vector<16xf32>
    %2 = vector.multi_reduction <add>, %1, %cst [1] : vector<16x128xf32> to vector<16xf32>
    %3 = vector.shape_cast %2 : vector<16xf32> to vector<16x1xf32>
    %cst_2 = arith.constant 3.125000e-02 : f32
    %4 = vector.broadcast %cst_2 : f32 to vector<16x1xf32>
    %5 = arith.mulf %3, %4 : vector<16x1xf32>
    %6 = arith.mulf %1, %1 : vector<16x128xf32>
    %cst_3 = arith.constant dense<0.000000e+00> : vector<16xf32>
    %7 = vector.multi_reduction <add>, %6, %cst_3 [1] : vector<16x128xf32> to vector<16xf32>
    %8 = vector.shape_cast %7 : vector<16xf32> to vector<16x1xf32>
    %cst_4 = arith.constant 3.125000e-02 : f32
    %9 = vector.broadcast %cst_4 : f32 to vector<16x1xf32>
    %10 = arith.mulf %8, %9 : vector<16x1xf32>
    %11 = vector.broadcast %5 : vector<16x1xf32> to vector<16x128xf32>
    %12 = arith.subf %1, %11 : vector<16x128xf32>
    %13 = arith.mulf %5, %5 : vector<16x1xf32>
    %14 = arith.subf %10, %13 : vector<16x1xf32>
    %cst_5 = arith.constant 9.99999974E-6 : f32
    %15 = vector.broadcast %cst_5 : f32 to vector<16x1xf32>
    %16 = arith.addf %14, %15 : vector<16x1xf32>
    %17 = math.rsqrt %16 : vector<16x1xf32>
    %18 = vector.broadcast %17 : vector<16x1xf32> to vector<16x128xf32>
    %19 = arith.mulf %12, %18 : vector<16x128xf32>
    %c0_6 = arith.constant 0 : index
    %c0_7 = arith.constant 0 : index
    %20 = vector.load %arg2[%c0_6, %c0_7] : memref<1x128xf32, #tpu.memory_space<vmem>>, vector<1x128xf32>
    %21 = vector.shape_cast %20 : vector<1x128xf32> to vector<128xf32>
    %22 = vector.shape_cast %21 : vector<128xf32> to vector<1x128xf32>
    %23 = vector.broadcast %22 : vector<1x128xf32> to vector<16x128xf32>
    %24 = arith.mulf %19, %23 : vector<16x128xf32>
    %c0_8 = arith.constant 0 : index
    %c0_9 = arith.constant 0 : index
    %25 = vector.load %arg3[%c0_8, %c0_9] : memref<1x128xf32, #tpu.memory_space<vmem>>, vector<1x128xf32>
    %26 = vector.shape_cast %25 : vector<1x128xf32> to vector<128xf32>
    %27 = vector.shape_cast %26 : vector<128xf32> to vector<1x128xf32>
    %28 = vector.broadcast %27 : vector<1x128xf32> to vector<16x128xf32>
    %29 = arith.addf %24, %28 : vector<16x128xf32>
    %30 = arith.truncf %29 : vector<16x128xf32> to vector<16x128xbf16>
    %c0_10 = arith.constant 0 : index
    %c0_11 = arith.constant 0 : index
    %31 = vector.load %arg4[%c0_10, %c0_11] : memref<128x384xbf16, #tpu.memory_space<vmem>>, vector<128x384xbf16>
    %cst_12 = arith.constant dense<0.000000e+00> : vector<16x384xf32>
    %32 = tpu.matmul %30, %31, %cst_12 {dimension_numbers = #tpu.dot_dimension_numbers<[1], [0], [0], [1], [0, 0, 1, 1], [], []>} : vector<16x128xbf16>, vector<128x384xbf16>, vector<16x384xf32> -> vector<16x384xf32>
    %c0_13 = arith.constant 0 : index
    %c0_14 = arith.constant 0 : index
    %33 = vector.load %arg5[%c0_13, %c0_14] : memref<1x384xf32, #tpu.memory_space<vmem>>, vector<1x384xf32>
    %34 = vector.shape_cast %33 : vector<1x384xf32> to vector<384xf32>
    %35 = vector.shape_cast %34 : vector<384xf32> to vector<1x384xf32>
    %36 = vector.broadcast %35 : vector<1x384xf32> to vector<16x384xf32>
    %37 = arith.addf %32, %36 : vector<16x384xf32>
    %38 = arith.truncf %37 : vector<16x384xf32> to vector<16x384xbf16>
    %cst_15 = arith.constant 0.000000e+00 : f32
    %39 = vector.broadcast %cst_15 : f32 to vector<16x128xf32>
    %40 = vector.extract_strided_slice %38 {offsets = [0, 0], sizes = [16, 8], strides = [1, 1]} : vector<16x384xbf16> to vector<16x8xbf16>
    %41 = vector.shape_cast %40 : vector<16x8xbf16> to vector<2x8x8xbf16>
    %42 = vector.extract_strided_slice %38 {offsets = [0, 128], sizes = [16, 8], strides = [1, 1]} : vector<16x384xbf16> to vector<16x8xbf16>
    %43 = vector.shape_cast %42 : vector<16x8xbf16> to vector<2x8x8xbf16>
    %44 = vector.extract_strided_slice %38 {offsets = [0, 256], sizes = [16, 8], strides = [1, 1]} : vector<16x384xbf16> to vector<16x8xbf16>
    %45 = vector.shape_cast %44 : vector<16x8xbf16> to vector<2x8x8xbf16>
    "tpu.trace_start"() <{level = 10 : i32, message = "bnd,bmd->bnm"}> : () -> ()
    %cst_16 = arith.constant dense<0.000000e+00> : vector<2x8x8xf32>
    %46 = tpu.matmul %41, %43, %cst_16 {dimension_numbers = #tpu.dot_dimension_numbers<[2], [2], [1], [1], [0, 0, 0, 1, 1, 1], [0], [0]>} : vector<2x8x8xbf16>, vector<2x8x8xbf16>, vector<2x8x8xf32> -> vector<2x8x8xf32>
    "tpu.trace_stop"() : () -> ()
    %cst_17 = arith.constant dense<0xFF800000> : vector<2x8xf32>
    %47 = vector.multi_reduction <maximumf>, %46, %cst_17 [2] : vector<2x8x8xf32> to vector<2x8xf32>
    %48 = vector.shape_cast %47 : vector<2x8xf32> to vector<2x8x1xf32>
    %49 = vector.broadcast %48 : vector<2x8x1xf32> to vector<2x8x8xf32>
    %50 = arith.subf %46, %49 : vector<2x8x8xf32>
    %51 = math.exp %50 : vector<2x8x8xf32>
    %cst_18 = arith.constant dense<0.000000e+00> : vector<2x8xf32>
    %52 = vector.multi_reduction <add>, %51, %cst_18 [2] : vector<2x8x8xf32> to vector<2x8xf32>
    %53 = vector.shape_cast %52 : vector<2x8xf32> to vector<2x8x1xf32>
    %54 = tpu.reciprocal %53 {approx = true} : vector<2x8x1xf32> -> vector<2x8x1xf32>
    %55 = vector.broadcast %54 : vector<2x8x1xf32> to vector<2x8x8xf32>
    %56 = arith.mulf %51, %55 : vector<2x8x8xf32>
    %57 = arith.truncf %56 : vector<2x8x8xf32> to vector<2x8x8xbf16>
    "tpu.trace_start"() <{level = 10 : i32, message = "bnm,bmd->bnd"}> : () -> ()
    %cst_19 = arith.constant dense<0.000000e+00> : vector<2x8x8xf32>
    %58 = tpu.matmul %57, %45, %cst_19 {dimension_numbers = #tpu.dot_dimension_numbers<[2], [1], [1], [2], [0, 0, 0, 1, 1, 2], [0], [0]>} : vector<2x8x8xbf16>, vector<2x8x8xbf16>, vector<2x8x8xf32> -> vector<2x8x8xf32>
    "tpu.trace_stop"() : () -> ()
    %59 = vector.shape_cast %58 : vector<2x8x8xf32> to vector<16x8xf32>
    %60 = arith.truncf %59 : vector<16x8xf32> to vector<16x8xbf16>
    %c0_20 = arith.constant 0 : index
    %c0_21 = arith.constant 0 : index
    %c0_22 = arith.constant 0 : index
    %61 = vector.load %arg6[%c0_20, %c0_21, %c0_22] : memref<4x8x128xbf16, #tpu.memory_space<vmem>>, vector<1x8x128xbf16>
    %62 = vector.shape_cast %61 : vector<1x8x128xbf16> to vector<8x128xbf16>
    %cst_23 = arith.constant dense<0.000000e+00> : vector<16x128xf32>
    %63 = tpu.matmul %60, %62, %cst_23 {dimension_numbers = #tpu.dot_dimension_numbers<[1], [0], [0], [1], [0, 0, 1, 1], [], []>} : vector<16x8xbf16>, vector<8x128xbf16>, vector<16x128xf32> -> vector<16x128xf32>
    %64 = arith.addf %39, %63 : vector<16x128xf32>
    %65 = vector.extract_strided_slice %38 {offsets = [0, 8], sizes = [16, 8], strides = [1, 1]} : vector<16x384xbf16> to vector<16x8xbf16>
    %66 = vector.shape_cast %65 : vector<16x8xbf16> to vector<2x8x8xbf16>
    %67 = vector.extract_strided_slice %38 {offsets = [0, 136], sizes = [16, 8], strides = [1, 1]} : vector<16x384xbf16> to vector<16x8xbf16>
    %68 = vector.shape_cast %67 : vector<16x8xbf16> to vector<2x8x8xbf16>
    %69 = vector.extract_strided_slice %38 {offsets = [0, 264], sizes = [16, 8], strides = [1, 1]} : vector<16x384xbf16> to vector<16x8xbf16>
    %70 = vector.shape_cast %69 : vector<16x8xbf16> to vector<2x8x8xbf16>
    "tpu.trace_start"() <{level = 10 : i32, message = "bnd,bmd->bnm"}> : () -> ()
    %cst_24 = arith.constant dense<0.000000e+00> : vector<2x8x8xf32>
    %71 = tpu.matmul %66, %68, %cst_24 {dimension_numbers = #tpu.dot_dimension_numbers<[2], [2], [1], [1], [0, 0, 0, 1, 1, 1], [0], [0]>} : vector<2x8x8xbf16>, vector<2x8x8xbf16>, vector<2x8x8xf32> -> vector<2x8x8xf32>
    "tpu.trace_stop"() : () -> ()
    %cst_25 = arith.constant dense<0xFF800000> : vector<2x8xf32>
    %72 = vector.multi_reduction <maximumf>, %71, %cst_25 [2] : vector<2x8x8xf32> to vector<2x8xf32>
    %73 = vector.shape_cast %72 : vector<2x8xf32> to vector<2x8x1xf32>
    %74 = vector.broadcast %73 : vector<2x8x1xf32> to vector<2x8x8xf32>
    %75 = arith.subf %71, %74 : vector<2x8x8xf32>
    %76 = math.exp %75 : vector<2x8x8xf32>
    %cst_26 = arith.constant dense<0.000000e+00> : vector<2x8xf32>
    %77 = vector.multi_reduction <add>, %76, %cst_26 [2] : vector<2x8x8xf32> to vector<2x8xf32>
    %78 = vector.shape_cast %77 : vector<2x8xf32> to vector<2x8x1xf32>
    %79 = tpu.reciprocal %78 {approx = true} : vector<2x8x1xf32> -> vector<2x8x1xf32>
    %80 = vector.broadcast %79 : vector<2x8x1xf32> to vector<2x8x8xf32>
    %81 = arith.mulf %76, %80 : vector<2x8x8xf32>
    %82 = arith.truncf %81 : vector<2x8x8xf32> to vector<2x8x8xbf16>
    "tpu.trace_start"() <{level = 10 : i32, message = "bnm,bmd->bnd"}> : () -> ()
    %cst_27 = arith.constant dense<0.000000e+00> : vector<2x8x8xf32>
    %83 = tpu.matmul %82, %70, %cst_27 {dimension_numbers = #tpu.dot_dimension_numbers<[2], [1], [1], [2], [0, 0, 0, 1, 1, 2], [0], [0]>} : vector<2x8x8xbf16>, vector<2x8x8xbf16>, vector<2x8x8xf32> -> vector<2x8x8xf32>
    "tpu.trace_stop"() : () -> ()
    %84 = vector.shape_cast %83 : vector<2x8x8xf32> to vector<16x8xf32>
    %85 = arith.truncf %84 : vector<16x8xf32> to vector<16x8xbf16>
    %c1 = arith.constant 1 : index
    %c0_28 = arith.constant 0 : index
    %c0_29 = arith.constant 0 : index
    %86 = vector.load %arg6[%c1, %c0_28, %c0_29] : memref<4x8x128xbf16, #tpu.memory_space<vmem>>, vector<1x8x128xbf16>
    %87 = vector.shape_cast %86 : vector<1x8x128xbf16> to vector<8x128xbf16>
    %cst_30 = arith.constant dense<0.000000e+00> : vector<16x128xf32>
    %88 = tpu.matmul %85, %87, %cst_30 {dimension_numbers = #tpu.dot_dimension_numbers<[1], [0], [0], [1], [0, 0, 1, 1], [], []>} : vector<16x8xbf16>, vector<8x128xbf16>, vector<16x128xf32> -> vector<16x128xf32>
    %89 = arith.addf %64, %88 : vector<16x128xf32>
    %90 = vector.extract_strided_slice %38 {offsets = [0, 16], sizes = [16, 8], strides = [1, 1]} : vector<16x384xbf16> to vector<16x8xbf16>
    %91 = vector.shape_cast %90 : vector<16x8xbf16> to vector<2x8x8xbf16>
    %92 = vector.extract_strided_slice %38 {offsets = [0, 144], sizes = [16, 8], strides = [1, 1]} : vector<16x384xbf16> to vector<16x8xbf16>
    %93 = vector.shape_cast %92 : vector<16x8xbf16> to vector<2x8x8xbf16>
    %94 = vector.extract_strided_slice %38 {offsets = [0, 272], sizes = [16, 8], strides = [1, 1]} : vector<16x384xbf16> to vector<16x8xbf16>
    %95 = vector.shape_cast %94 : vector<16x8xbf16> to vector<2x8x8xbf16>
    "tpu.trace_start"() <{level = 10 : i32, message = "bnd,bmd->bnm"}> : () -> ()
    %cst_31 = arith.constant dense<0.000000e+00> : vector<2x8x8xf32>
    %96 = tpu.matmul %91, %93, %cst_31 {dimension_numbers = #tpu.dot_dimension_numbers<[2], [2], [1], [1], [0, 0, 0, 1, 1, 1], [0], [0]>} : vector<2x8x8xbf16>, vector<2x8x8xbf16>, vector<2x8x8xf32> -> vector<2x8x8xf32>
    "tpu.trace_stop"() : () -> ()
    %cst_32 = arith.constant dense<0xFF800000> : vector<2x8xf32>
    %97 = vector.multi_reduction <maximumf>, %96, %cst_32 [2] : vector<2x8x8xf32> to vector<2x8xf32>
    %98 = vector.shape_cast %97 : vector<2x8xf32> to vector<2x8x1xf32>
    %99 = vector.broadcast %98 : vector<2x8x1xf32> to vector<2x8x8xf32>
    %100 = arith.subf %96, %99 : vector<2x8x8xf32>
    %101 = math.exp %100 : vector<2x8x8xf32>
    %cst_33 = arith.constant dense<0.000000e+00> : vector<2x8xf32>
    %102 = vector.multi_reduction <add>, %101, %cst_33 [2] : vector<2x8x8xf32> to vector<2x8xf32>
    %103 = vector.shape_cast %102 : vector<2x8xf32> to vector<2x8x1xf32>
    %104 = tpu.reciprocal %103 {approx = true} : vector<2x8x1xf32> -> vector<2x8x1xf32>
    %105 = vector.broadcast %104 : vector<2x8x1xf32> to vector<2x8x8xf32>
    %106 = arith.mulf %101, %105 : vector<2x8x8xf32>
    %107 = arith.truncf %106 : vector<2x8x8xf32> to vector<2x8x8xbf16>
    "tpu.trace_start"() <{level = 10 : i32, message = "bnm,bmd->bnd"}> : () -> ()
    %cst_34 = arith.constant dense<0.000000e+00> : vector<2x8x8xf32>
    %108 = tpu.matmul %107, %95, %cst_34 {dimension_numbers = #tpu.dot_dimension_numbers<[2], [1], [1], [2], [0, 0, 0, 1, 1, 2], [0], [0]>} : vector<2x8x8xbf16>, vector<2x8x8xbf16>, vector<2x8x8xf32> -> vector<2x8x8xf32>
    "tpu.trace_stop"() : () -> ()
    %109 = vector.shape_cast %108 : vector<2x8x8xf32> to vector<16x8xf32>
    %110 = arith.truncf %109 : vector<16x8xf32> to vector<16x8xbf16>
    %c2 = arith.constant 2 : index
    %c0_35 = arith.constant 0 : index
    %c0_36 = arith.constant 0 : index
    %111 = vector.load %arg6[%c2, %c0_35, %c0_36] : memref<4x8x128xbf16, #tpu.memory_space<vmem>>, vector<1x8x128xbf16>
    %112 = vector.shape_cast %111 : vector<1x8x128xbf16> to vector<8x128xbf16>
    %cst_37 = arith.constant dense<0.000000e+00> : vector<16x128xf32>
    %113 = tpu.matmul %110, %112, %cst_37 {dimension_numbers = #tpu.dot_dimension_numbers<[1], [0], [0], [1], [0, 0, 1, 1], [], []>} : vector<16x8xbf16>, vector<8x128xbf16>, vector<16x128xf32> -> vector<16x128xf32>
    %114 = arith.addf %89, %113 : vector<16x128xf32>
    %115 = vector.extract_strided_slice %38 {offsets = [0, 24], sizes = [16, 8], strides = [1, 1]} : vector<16x384xbf16> to vector<16x8xbf16>
    %116 = vector.shape_cast %115 : vector<16x8xbf16> to vector<2x8x8xbf16>
    %117 = vector.extract_strided_slice %38 {offsets = [0, 152], sizes = [16, 8], strides = [1, 1]} : vector<16x384xbf16> to vector<16x8xbf16>
    %118 = vector.shape_cast %117 : vector<16x8xbf16> to vector<2x8x8xbf16>
    %119 = vector.extract_strided_slice %38 {offsets = [0, 280], sizes = [16, 8], strides = [1, 1]} : vector<16x384xbf16> to vector<16x8xbf16>
    %120 = vector.shape_cast %119 : vector<16x8xbf16> to vector<2x8x8xbf16>
    "tpu.trace_start"() <{level = 10 : i32, message = "bnd,bmd->bnm"}> : () -> ()
    %cst_38 = arith.constant dense<0.000000e+00> : vector<2x8x8xf32>
    %121 = tpu.matmul %116, %118, %cst_38 {dimension_numbers = #tpu.dot_dimension_numbers<[2], [2], [1], [1], [0, 0, 0, 1, 1, 1], [0], [0]>} : vector<2x8x8xbf16>, vector<2x8x8xbf16>, vector<2x8x8xf32> -> vector<2x8x8xf32>
    "tpu.trace_stop"() : () -> ()
    %cst_39 = arith.constant dense<0xFF800000> : vector<2x8xf32>
    %122 = vector.multi_reduction <maximumf>, %121, %cst_39 [2] : vector<2x8x8xf32> to vector<2x8xf32>
    %123 = vector.shape_cast %122 : vector<2x8xf32> to vector<2x8x1xf32>
    %124 = vector.broadcast %123 : vector<2x8x1xf32> to vector<2x8x8xf32>
    %125 = arith.subf %121, %124 : vector<2x8x8xf32>
    %126 = math.exp %125 : vector<2x8x8xf32>
    %cst_40 = arith.constant dense<0.000000e+00> : vector<2x8xf32>
    %127 = vector.multi_reduction <add>, %126, %cst_40 [2] : vector<2x8x8xf32> to vector<2x8xf32>
    %128 = vector.shape_cast %127 : vector<2x8xf32> to vector<2x8x1xf32>
    %129 = tpu.reciprocal %128 {approx = true} : vector<2x8x1xf32> -> vector<2x8x1xf32>
    %130 = vector.broadcast %129 : vector<2x8x1xf32> to vector<2x8x8xf32>
    %131 = arith.mulf %126, %130 : vector<2x8x8xf32>
    %132 = arith.truncf %131 : vector<2x8x8xf32> to vector<2x8x8xbf16>
    "tpu.trace_start"() <{level = 10 : i32, message = "bnm,bmd->bnd"}> : () -> ()
    %cst_41 = arith.constant dense<0.000000e+00> : vector<2x8x8xf32>
    %133 = tpu.matmul %132, %120, %cst_41 {dimension_numbers = #tpu.dot_dimension_numbers<[2], [1], [1], [2], [0, 0, 0, 1, 1, 2], [0], [0]>} : vector<2x8x8xbf16>, vector<2x8x8xbf16>, vector<2x8x8xf32> -> vector<2x8x8xf32>
    "tpu.trace_stop"() : () -> ()
    %134 = vector.shape_cast %133 : vector<2x8x8xf32> to vector<16x8xf32>
    %135 = arith.truncf %134 : vector<16x8xf32> to vector<16x8xbf16>
    %c3 = arith.constant 3 : index
    %c0_42 = arith.constant 0 : index
    %c0_43 = arith.constant 0 : index
    %136 = vector.load %arg6[%c3, %c0_42, %c0_43] : memref<4x8x128xbf16, #tpu.memory_space<vmem>>, vector<1x8x128xbf16>
    %137 = vector.shape_cast %136 : vector<1x8x128xbf16> to vector<8x128xbf16>
    %cst_44 = arith.constant dense<0.000000e+00> : vector<16x128xf32>
    %138 = tpu.matmul %135, %137, %cst_44 {dimension_numbers = #tpu.dot_dimension_numbers<[1], [0], [0], [1], [0, 0, 1, 1], [], []>} : vector<16x8xbf16>, vector<8x128xbf16>, vector<16x128xf32> -> vector<16x128xf32>
    %139 = arith.addf %114, %138 : vector<16x128xf32>
    %140 = arith.addf %1, %139 : vector<16x128xf32>
    %c0_45 = arith.constant 0 : index
    %c0_46 = arith.constant 0 : index
    %141 = vector.load %arg7[%c0_45, %c0_46] : memref<1x128xf32, #tpu.memory_space<vmem>>, vector<1x128xf32>
    %142 = vector.shape_cast %141 : vector<1x128xf32> to vector<128xf32>
    %143 = vector.shape_cast %142 : vector<128xf32> to vector<1x128xf32>
    %144 = vector.broadcast %143 : vector<1x128xf32> to vector<16x128xf32>
    %145 = arith.addf %140, %144 : vector<16x128xf32>
    %cst_47 = arith.constant dense<0.000000e+00> : vector<16xf32>
    %146 = vector.multi_reduction <add>, %145, %cst_47 [1] : vector<16x128xf32> to vector<16xf32>
    %147 = vector.shape_cast %146 : vector<16xf32> to vector<16x1xf32>
    %cst_48 = arith.constant 3.125000e-02 : f32
    %148 = vector.broadcast %cst_48 : f32 to vector<16x1xf32>
    %149 = arith.mulf %147, %148 : vector<16x1xf32>
    %150 = arith.mulf %145, %145 : vector<16x128xf32>
    %cst_49 = arith.constant dense<0.000000e+00> : vector<16xf32>
    %151 = vector.multi_reduction <add>, %150, %cst_49 [1] : vector<16x128xf32> to vector<16xf32>
    %152 = vector.shape_cast %151 : vector<16xf32> to vector<16x1xf32>
    %cst_50 = arith.constant 3.125000e-02 : f32
    %153 = vector.broadcast %cst_50 : f32 to vector<16x1xf32>
    %154 = arith.mulf %152, %153 : vector<16x1xf32>
    %155 = vector.broadcast %149 : vector<16x1xf32> to vector<16x128xf32>
    %156 = arith.subf %145, %155 : vector<16x128xf32>
    %157 = arith.mulf %149, %149 : vector<16x1xf32>
    %158 = arith.subf %154, %157 : vector<16x1xf32>
    %cst_51 = arith.constant 9.99999974E-6 : f32
    %159 = vector.broadcast %cst_51 : f32 to vector<16x1xf32>
    %160 = arith.addf %158, %159 : vector<16x1xf32>
    %161 = math.rsqrt %160 : vector<16x1xf32>
    %162 = vector.broadcast %161 : vector<16x1xf32> to vector<16x128xf32>
    %163 = arith.mulf %156, %162 : vector<16x128xf32>
    %c0_52 = arith.constant 0 : index
    %c0_53 = arith.constant 0 : index
    %164 = vector.load %arg8[%c0_52, %c0_53] : memref<1x128xf32, #tpu.memory_space<vmem>>, vector<1x128xf32>
    %165 = vector.shape_cast %164 : vector<1x128xf32> to vector<128xf32>
    %166 = vector.shape_cast %165 : vector<128xf32> to vector<1x128xf32>
    %167 = vector.broadcast %166 : vector<1x128xf32> to vector<16x128xf32>
    %168 = arith.mulf %163, %167 : vector<16x128xf32>
    %c0_54 = arith.constant 0 : index
    %c0_55 = arith.constant 0 : index
    %169 = vector.load %arg9[%c0_54, %c0_55] : memref<1x128xf32, #tpu.memory_space<vmem>>, vector<1x128xf32>
    %170 = vector.shape_cast %169 : vector<1x128xf32> to vector<128xf32>
    %171 = vector.shape_cast %170 : vector<128xf32> to vector<1x128xf32>
    %172 = vector.broadcast %171 : vector<1x128xf32> to vector<16x128xf32>
    %173 = arith.addf %168, %172 : vector<16x128xf32>
    %174 = arith.truncf %173 : vector<16x128xf32> to vector<16x128xbf16>
    %c0_56 = arith.constant 0 : index
    %c0_57 = arith.constant 0 : index
    %175 = vector.load %arg10[%c0_56, %c0_57] : memref<128x128xbf16, #tpu.memory_space<vmem>>, vector<128x128xbf16>
    %cst_58 = arith.constant dense<0.000000e+00> : vector<16x128xf32>
    %176 = tpu.matmul %174, %175, %cst_58 {dimension_numbers = #tpu.dot_dimension_numbers<[1], [0], [0], [1], [0, 0, 1, 1], [], []>} : vector<16x128xbf16>, vector<128x128xbf16>, vector<16x128xf32> -> vector<16x128xf32>
    %c0_59 = arith.constant 0 : index
    %c0_60 = arith.constant 0 : index
    %177 = vector.load %arg11[%c0_59, %c0_60] : memref<1x128xf32, #tpu.memory_space<vmem>>, vector<1x128xf32>
    %178 = vector.shape_cast %177 : vector<1x128xf32> to vector<128xf32>
    %179 = vector.shape_cast %178 : vector<128xf32> to vector<1x128xf32>
    %180 = vector.broadcast %179 : vector<1x128xf32> to vector<16x128xf32>
    %181 = arith.addf %176, %180 : vector<16x128xf32>
    %cst_61 = arith.constant 1.702000e+00 : f32
    %182 = vector.broadcast %cst_61 : f32 to vector<16x128xf32>
    %183 = arith.mulf %182, %181 : vector<16x128xf32>
    %184 = arith.negf %183 : vector<16x128xf32>
    %185 = math.exp %184 : vector<16x128xf32>
    %cst_62 = arith.constant 1.000000e+00 : f32
    %186 = vector.broadcast %cst_62 : f32 to vector<16x128xf32>
    %187 = arith.addf %186, %185 : vector<16x128xf32>
    %188 = arith.divf %186, %187 : vector<16x128xf32>
    %189 = arith.mulf %181, %188 : vector<16x128xf32>
    %190 = arith.truncf %189 : vector<16x128xf32> to vector<16x128xbf16>
    %c0_63 = arith.constant 0 : index
    %c0_64 = arith.constant 0 : index
    %191 = vector.load %arg12[%c0_63, %c0_64] : memref<128x128xbf16, #tpu.memory_space<vmem>>, vector<128x128xbf16>
    %cst_65 = arith.constant dense<0.000000e+00> : vector<16x128xf32>
    %192 = tpu.matmul %190, %191, %cst_65 {dimension_numbers = #tpu.dot_dimension_numbers<[1], [0], [0], [1], [0, 0, 1, 1], [], []>} : vector<16x128xbf16>, vector<128x128xbf16>, vector<16x128xf32> -> vector<16x128xf32>
    %c0_66 = arith.constant 0 : index
    %c0_67 = arith.constant 0 : index
    %193 = vector.load %arg13[%c0_66, %c0_67] : memref<1x128xf32, #tpu.memory_space<vmem>>, vector<1x128xf32>
    %194 = vector.shape_cast %193 : vector<1x128xf32> to vector<128xf32>
    %195 = vector.shape_cast %194 : vector<128xf32> to vector<1x128xf32>
    %196 = vector.broadcast %195 : vector<1x128xf32> to vector<16x128xf32>
    %197 = arith.addf %192, %196 : vector<16x128xf32>
    %198 = arith.addf %145, %197 : vector<16x128xf32>
    %199 = vector.shape_cast %198 : vector<16x128xf32> to vector<2x8x128xf32>
    %c0_68 = arith.constant 0 : index
    %c0_69 = arith.constant 0 : index
    %c0_70 = arith.constant 0 : index
    %200 = vector.load %arg14[%c0_68, %c0_69, %c0_70] : memref<2x8x128xf32, #tpu.memory_space<vmem>>, vector<2x8x128xf32>
    tpu.vector_store %arg14[%c0_68, %c0_69, %c0_70], %199 {strides = array<i32>} : memref<2x8x128xf32, #tpu.memory_space<vmem>>, vector<2x8x128xf32>,
    return
  }
  func.func @transform_0(%arg0: i32) -> (i32, i32, i32) {
    %c0_i32 = arith.constant 0 : i32
    %c0_i32_0 = arith.constant 0 : i32
    %c0_i32_1 = arith.constant 0 : i32
    return %arg0, %c0_i32, %c0_i32_0 : i32, i32, i32
  }
  func.func @transform_1(%arg0: i32) -> (i32, i32) {
    %c0_i32 = arith.constant 0 : i32
    %c0_i32_0 = arith.constant 0 : i32
    %c0_i32_1 = arith.constant 0 : i32
    return %c0_i32, %c0_i32_0 : i32, i32
  }
  func.func @transform_2(%arg0: i32) -> (i32, i32) {
    %c0_i32 = arith.constant 0 : i32
    %c0_i32_0 = arith.constant 0 : i32
    %c0_i32_1 = arith.constant 0 : i32
    return %c0_i32, %c0_i32_0 : i32, i32
  }
  func.func @transform_3(%arg0: i32) -> (i32, i32) {
    %c0_i32 = arith.constant 0 : i32
    %c0_i32_0 = arith.constant 0 : i32
    %c0_i32_1 = arith.constant 0 : i32
    return %c0_i32, %c0_i32_0 : i32, i32
  }
  func.func @transform_4(%arg0: i32) -> (i32, i32) {
    %c0_i32 = arith.constant 0 : i32
    %c0_i32_0 = arith.constant 0 : i32
    %c0_i32_1 = arith.constant 0 : i32
    return %c0_i32, %c0_i32_0 : i32, i32
  }
  func.func @transform_5(%arg0: i32) -> (i32, i32, i32) {
    %c0_i32 = arith.constant 0 : i32
    %c0_i32_0 = arith.constant 0 : i32
    %c0_i32_1 = arith.constant 0 : i32
    %c0_i32_2 = arith.constant 0 : i32
    return %c0_i32, %c0_i32_0, %c0_i32_1 : i32, i32, i32
  }
  func.func @transform_6(%arg0: i32) -> (i32, i32) {
    %c0_i32 = arith.constant 0 : i32
    %c0_i32_0 = arith.constant 0 : i32
    %c0_i32_1 = arith.constant 0 : i32
    return %c0_i32, %c0_i32_0 : i32, i32
  }
  func.func @transform_7(%arg0: i32) -> (i32, i32) {
    %c0_i32 = arith.constant 0 : i32
    %c0_i32_0 = arith.constant 0 : i32
    %c0_i32_1 = arith.constant 0 : i32
    return %c0_i32, %c0_i32_0 : i32, i32
  }
  func.func @transform_8(%arg0: i32) -> (i32, i32) {
    %c0_i32 = arith.constant 0 : i32
    %c0_i32_0 = arith.constant 0 : i32
    %c0_i32_1 = arith.constant 0 : i32
    return %c0_i32, %c0_i32_0 : i32, i32
  }
  func.func @transform_9(%arg0: i32) -> (i32, i32) {
    %c0_i32 = arith.constant 0 : i32
    %c0_i32_0 = arith.constant 0 : i32
    %c0_i32_1 = arith.constant 0 : i32
    return %c0_i32, %c0_i32_0 : i32, i32
  }
  func.func @transform_10(%arg0: i32) -> (i32, i32) {
    %c0_i32 = arith.constant 0 : i32
    %c0_i32_0 = arith.constant 0 : i32
    %c0_i32_1 = arith.constant 0 : i32
    return %c0_i32, %c0_i32_0 : i32, i32
  }
  func.func @transform_11(%arg0: i32) -> (i32, i32) {
    %c0_i32 = arith.constant 0 : i32
    %c0_i32_0 = arith.constant 0 : i32
    %c0_i32_1 = arith.constant 0 : i32
    return %c0_i32, %c0_i32_0 : i32, i32
  }
  func.func @transform_12(%arg0: i32) -> (i32, i32) {
    %c0_i32 = arith.constant 0 : i32
    %c0_i32_0 = arith.constant 0 : i32
    %c0_i32_1 = arith.constant 0 : i32
    return %c0_i32, %c0_i32_0 : i32, i32
  }
  func.func @transform_13(%arg0: i32) -> (i32, i32, i32) {
    %c0_i32 = arith.constant 0 : i32
    %c0_i32_0 = arith.constant 0 : i32
    %c0_i32_1 = arith.constant 0 : i32
    return %arg0, %c0_i32, %c0_i32_0 : i32, i32, i32
  }
}

</mosaic_0001>

<llo_original>
// kernel: tpu_custom_call.1
$region0: #{tpu_custom_call.1}
  #allocation0 [shape = 'u32[]', space=smem, size = 0x4, offset = 0x4, fixed_abs, tag = 'smem constant byte address 0x4 - core index']
  #allocation1 [shape = 'u32[144,128]{1,0:T(1,128)}', space=vmem, size = 0x12000, scoped, tag = 'internal scratch']
  %s0 = inlined_call_operand.hbm [shape: f32[2,8,128], index: 0, kind: input, shape index: {}]
  %s1 = inlined_call_operand.vmem [shape: f32[1,128], index: 1, kind: input, shape index: {}]
  %s2 = inlined_call_operand.vmem [shape: f32[1,128], index: 2, kind: input, shape index: {}]
  %s3 = inlined_call_operand.hbm [shape: bf16[128,384], index: 3, kind: input, shape index: {}]
  %s4 = inlined_call_operand.hbm [shape: f32[1,384], index: 4, kind: input, shape index: {}]
  %s5 = inlined_call_operand.vmem [shape: bf16[4,8,128], index: 5, kind: input, shape index: {}]
  %s6 = inlined_call_operand.vmem [shape: f32[1,128], index: 6, kind: input, shape index: {}]
  %s7 = inlined_call_operand.vmem [shape: f32[1,128], index: 7, kind: input, shape index: {}]
  %s8 = inlined_call_operand.vmem [shape: f32[1,128], index: 8, kind: input, shape index: {}]
  %s9 = inlined_call_operand.hbm [shape: bf16[128,128], index: 9, kind: input, shape index: {}]
  %s10 = inlined_call_operand.vmem [shape: f32[1,128], index: 10, kind: input, shape index: {}]
  %s11 = inlined_call_operand.hbm [shape: bf16[128,128], index: 11, kind: input, shape index: {}]
  %s12 = inlined_call_operand.vmem [shape: f32[1,128], index: 12, kind: input, shape index: {}]
  %s13 = inlined_call_operand.hbm [shape: f32[2,8,128], index: 13, kind: output, shape index: {}]
  %s14 = sld [smem:[#allocation0]]
  $region82: #{tpu_custom_call.1} parent=0
    _
  %s16 = ssub.s32 1, %s14
  %s17 = scalar_select 0, %s16, %s14
  $region1: #{tpu_custom_call.1} parent=0
    #allocation2 [shape = 'u8[8192]{0}', space=vmem, size = 0x2000, scoped, tag = 'input window, operand 0, single buffered']
    #allocation3 [shape = 's32[1]{0}', space=sflag, size = 0x4, scoped, tag = 'scoped memory for tpu_custom_call.1']
    #allocation4 [shape = 's32[1]{0}', space=sflag, size = 0x4, scoped, tag = 'scoped memory for tpu_custom_call.1']
    #allocation5 [shape = 'u8[98304]{0}', space=vmem, size = 0x18000, scoped, tag = 'input window, operand 3, single buffered']
    #allocation6 [shape = 's32[1]{0}', space=sflag, size = 0x4, scoped, tag = 'scoped memory for tpu_custom_call.1']
    #allocation7 [shape = 'u8[1536]{0}', space=vmem, size = 0x800, scoped, tag = 'input window, operand 4, single buffered']
    #allocation8 [shape = 'u8[32768]{0}', space=vmem, size = 0x8000, scoped, tag = 'input window, operand 9, single buffered']
    #allocation9 [shape = 's32[1]{0}', space=sflag, size = 0x4, scoped, tag = 'scoped memory for tpu_custom_call.1']
    #allocation10 [shape = 'u8[32768]{0}', space=vmem, size = 0x8000, scoped, tag = 'input window, operand 11, single buffered']
    #allocation11 [shape = 'u8[8192]{0}', space=vmem, size = 0x2000, scoped, tag = 'output window, operand 0, single buffered']
    %18 = vsyncpa [#allocation3], 0
    %19 = vsyncpa [#allocation6], 0
    %20 = vsyncpa [#allocation9], 0
    %21 = vsyncpa [#allocation4], 0
    // Predicated region
    $region2: #{tpu_custom_call.1} parent=1 // pred_check
      _
    $region3: #{tpu_custom_call.1} parent=1 // pred_check_branch
      %23 = sbr.rel (0) target = $region5
    $region4: #{tpu_custom_call.1} parent=1 // pred_region
      %s25 = ssub.s32 256, 256
      %26 = vsyncadd [#allocation3], %s25
      %s27 = sshll.u32 [#allocation2], 4
      %s28 = int_to_ptr.vmem [resolvable:$true] %s27
      %33 = dma.hbm_to_vmem [thread:$0]  %s0, 256, %s28, [#allocation3], 128, 128, 8
    $region5: #{tpu_custom_call.1} parent=1 // pred_fallthru
      _
    // Predicated region
    $region6: #{tpu_custom_call.1} parent=1 // pred_check
      _
    $region7: #{tpu_custom_call.1} parent=1 // pred_check_branch
      %35 = sbr.rel (0) target = $region9
    $region8: #{tpu_custom_call.1} parent=1 // pred_region
      _
    $region9: #{tpu_custom_call.1} parent=1 // pred_fallthru
      _
    // Predicated region
    $region10: #{tpu_custom_call.1} parent=1 // pred_check
      _
    $region11: #{tpu_custom_call.1} parent=1 // pred_check_branch
      %37 = sbr.rel (0) target = $region13
    $region12: #{tpu_custom_call.1} parent=1 // pred_region
      _
    $region13: #{tpu_custom_call.1} parent=1 // pred_fallthru
      _
    // Predicated region
    $region14: #{tpu_custom_call.1} parent=1 // pred_check
      _
    $region15: #{tpu_custom_call.1} parent=1 // pred_check_branch
      %39 = sbr.rel (0) target = $region17
    $region16: #{tpu_custom_call.1} parent=1 // pred_region
      %s41 = ssub.s32 3072, 3072
      %42 = vsyncadd [#allocation6], %s41
      %s43 = sshll.u32 [#allocation5], 4
      %s44 = int_to_ptr.vmem [resolvable:$true] %s43
      %49 = dma.hbm_to_vmem [thread:$0]  %s3, 3072, %s44, [#allocation6], 192, 192, 12
    $region17: #{tpu_custom_call.1} parent=1 // pred_fallthru
      _
    // Predicated region
    $region18: #{tpu_custom_call.1} parent=1 // pred_check
      _
    $region19: #{tpu_custom_call.1} parent=1 // pred_check_branch
      %51 = sbr.rel (0) target = $region21
    $region20: #{tpu_custom_call.1} parent=1 // pred_region
      %s53 = ssub.s32 48, 48
      %54 = vsyncadd [#allocation6], %s53
      %s56 = sshll.u32 [#allocation7], 4
      %s57 = int_to_ptr.vmem [resolvable:$true] %s56
      %59 = dma.hbm_to_vmem [thread:$0]  %s4, 48, %s57, [#allocation6]
    $region21: #{tpu_custom_call.1} parent=1 // pred_fallthru
      _
    // Predicated region
    $region22: #{tpu_custom_call.1} parent=1 // pred_check
      _
    $region23: #{tpu_custom_call.1} parent=1 // pred_check_branch
      %61 = sbr.rel (0) target = $region25
    $region24: #{tpu_custom_call.1} parent=1 // pred_region
      _
    $region25: #{tpu_custom_call.1} parent=1 // pred_fallthru
      _
    // Predicated region
    $region26: #{tpu_custom_call.1} parent=1 // pred_check
      _
    $region27: #{tpu_custom_call.1} parent=1 // pred_check_branch
      %63 = sbr.rel (0) target = $region29
    $region28: #{tpu_custom_call.1} parent=1 // pred_region
      _
    $region29: #{tpu_custom_call.1} parent=1 // pred_fallthru
      _
    // Predicated region
    $region30: #{tpu_custom_call.1} parent=1 // pred_check
      _
    $region31: #{tpu_custom_call.1} parent=1 // pred_check_branch
      %65 = sbr.rel (0) target = $region33
    $region32: #{tpu_custom_call.1} parent=1 // pred_region
      _
    $region33: #{tpu_custom_call.1} parent=1 // pred_fallthru
      _
    // Predicated region
    $region34: #{tpu_custom_call.1} parent=1 // pred_check
      _
    $region35: #{tpu_custom_call.1} parent=1 // pred_check_branch
      %67 = sbr.rel (0) target = $region37
    $region36: #{tpu_custom_call.1} parent=1 // pred_region
      _
    $region37: #{tpu_custom_call.1} parent=1 // pred_fallthru
      _
    // Predicated region
    $region38: #{tpu_custom_call.1} parent=1 // pred_check
      _
    $region39: #{tpu_custom_call.1} parent=1 // pred_check_branch
      %69 = sbr.rel (0) target = $region41
    $region40: #{tpu_custom_call.1} parent=1 // pred_region
      %s71 = ssub.s32 1024, 1024
      %72 = vsyncadd [#allocation9], %s71
      %s73 = sshll.u32 [#allocation8], 4
      %s74 = int_to_ptr.vmem [resolvable:$true] %s73
      %79 = dma.hbm_to_vmem [thread:$0]  %s9, 1024, %s74, [#allocation9], 64, 64, 4
    $region41: #{tpu_custom_call.1} parent=1 // pred_fallthru
      _
    // Predicated region
    $region42: #{tpu_custom_call.1} parent=1 // pred_check
      _
    $region43: #{tpu_custom_call.1} parent=1 // pred_check_branch
      %81 = sbr.rel (0) target = $region45
    $region44: #{tpu_custom_call.1} parent=1 // pred_region
      _
    $region45: #{tpu_custom_call.1} parent=1 // pred_fallthru
      _
    // Predicated region
    $region46: #{tpu_custom_call.1} parent=1 // pred_check
      _
    $region47: #{tpu_custom_call.1} parent=1 // pred_check_branch
      %83 = sbr.rel (0) target = $region49
    $region48: #{tpu_custom_call.1} parent=1 // pred_region
      %s85 = ssub.s32 1024, 1024
      %86 = vsyncadd [#allocation9], %s85
      %s87 = sshll.u32 [#allocation10], 4
      %s88 = int_to_ptr.vmem [resolvable:$true] %s87
      %93 = dma.hbm_to_vmem [thread:$0]  %s11, 1024, %s88, [#allocation9], 64, 64, 4
    $region49: #{tpu_custom_call.1} parent=1 // pred_fallthru
      _
    // Predicated region
    $region50: #{tpu_custom_call.1} parent=1 // pred_check
      _
    $region51: #{tpu_custom_call.1} parent=1 // pred_check_branch
      %95 = sbr.rel (0) target = $region53
    $region52: #{tpu_custom_call.1} parent=1 // pred_region
      _
    $region53: #{tpu_custom_call.1} parent=1 // pred_fallthru
      _
    // Predicated region
    $region54: #{tpu_custom_call.1} parent=1 // pred_check
      _
    $region55: #{tpu_custom_call.1} parent=1 // pred_check_branch
      %97 = sbr.rel (0) target = $region57
    $region56: #{tpu_custom_call.1} parent=1 // pred_region
      %98 = dma.done [#allocation3], 256
    $region57: #{tpu_custom_call.1} parent=1 // pred_fallthru
      _
    // Predicated region
    $region58: #{tpu_custom_call.1} parent=1 // pred_check
      _
    $region59: #{tpu_custom_call.1} parent=1 // pred_check_branch
      %100 = sbr.rel (0) target = $region61
    $region60: #{tpu_custom_call.1} parent=1 // pred_region
      %101 = dma.done [#allocation6], 3072
    $region61: #{tpu_custom_call.1} parent=1 // pred_fallthru
      _
    // Predicated region
    $region62: #{tpu_custom_call.1} parent=1 // pred_check
      _
    $region63: #{tpu_custom_call.1} parent=1 // pred_check_branch
      %103 = sbr.rel (0) target = $region65
    $region64: #{tpu_custom_call.1} parent=1 // pred_region
      %104 = dma.done [#allocation6], 48
    $region65: #{tpu_custom_call.1} parent=1 // pred_fallthru
      _
    // Predicated region
    $region66: #{tpu_custom_call.1} parent=1 // pred_check
      _
    $region67: #{tpu_custom_call.1} parent=1 // pred_check_branch
      %106 = sbr.rel (0) target = $region69
    $region68: #{tpu_custom_call.1} parent=1 // pred_region
      %107 = dma.done [#allocation9], 1024
    $region69: #{tpu_custom_call.1} parent=1 // pred_fallthru
      _
    // Predicated region
    $region70: #{tpu_custom_call.1} parent=1 // pred_check
      _
    $region71: #{tpu_custom_call.1} parent=1 // pred_check_branch
      %109 = sbr.rel (0) target = $region73
    $region72: #{tpu_custom_call.1} parent=1 // pred_region
      %110 = dma.done [#allocation9], 1024
    $region73: #{tpu_custom_call.1} parent=1 // pred_fallthru
      _
    %v112 = vld [vmem:[#allocation2] sm:$0xff]
    %v113 = vld [vmem:[#allocation2 + $0x8] sm:$0xff]
    %114 = vadd.xlane.f32.xlu0 %v112
    %v115 = vpop.xlane.xlu0 %114
    %116 = vadd.xlane.f32.xlu0 %v113
    %v117 = vpop.xlane.xlu0 %116
    %v118 = vmul.f32 %v115, 0.03125
    %v119 = vmul.f32 %v117, 0.03125
    %v120 = vmul.f32 %v112, %v112
    %v121 = vmul.f32 %v113, %v113
    %122 = vadd.xlane.f32.xlu0 %v120
    %v123 = vpop.xlane.xlu0 %122
    %124 = vadd.xlane.f32.xlu0 %v121
    %v125 = vpop.xlane.xlu0 %124
    %v126 = vmul.f32 %v123, 0.03125
    %v127 = vmul.f32 %v125, 0.03125
    %v128 = vsub.f32 %v112, %v118
    %v129 = vsub.f32 %v113, %v119
    %v130 = vmul.f32 %v118, %v118
    %v131 = vmul.f32 %v119, %v119
    %v132 = vsub.f32 %v126, %v130
    %v133 = vsub.f32 %v127, %v131
    %v134 = vadd.f32 %v132, 1e-05
    %v135 = vadd.f32 %v133, 1e-05
    %v136 = vrsqrt.pop %v134
    %v137 = vrsqrt.pop %v135
    %v138 = vmul.f32 %v128, %v136
    %v139 = vmul.f32 %v129, %v137
    %v140 = vld [vmem:[%s1] sm:$0x1]
    %v142 = vlaneseq
    %v143 = vshrl.u32 %v142, 7
    %v144 = vsub.s32 0, %v143
    %v145 = vrot.slane %v140, %v144
    %v147 = vmul.f32 %v138, %v145
    %v148 = vmul.f32 %v139, %v145
    %v149 = vld [vmem:[%s2] sm:$0x1]
    %v151 = vlaneseq
    %v152 = vshrl.u32 %v151, 7
    %v153 = vsub.s32 0, %v152
    %v154 = vrot.slane %v149, %v153
    %v156 = vadd.f32 %v147, %v154
    %v157 = vadd.f32 %v148, %v154
    %v158 = vpack.c.bf16 %v157, %v156
    %v159 = vld [vmem:[#allocation5] sm:$0xff]
    %v160 = vld [vmem:[#allocation5 + $0x8] sm:$0xf]
    %v161 = vld [vmem:[#allocation5 + $0xc] sm:$0xff]
    %v162 = vld [vmem:[#allocation5 + $0x14] sm:$0xf]
    %v163 = vld [vmem:[#allocation5 + $0x18] sm:$0xff]
    %v164 = vld [vmem:[#allocation5 + $0x20] sm:$0xf]
    %v165 = vld [vmem:[#allocation5 + $0x24] sm:$0xff]
    %v166 = vld [vmem:[#allocation5 + $0x2c] sm:$0xf]
    %v167 = vld [vmem:[#allocation5 + $0x30] sm:$0xff]
    %v168 = vld [vmem:[#allocation5 + $0x38] sm:$0xf]
    %v169 = vld [vmem:[#allocation5 + $0x3c] sm:$0xff]
    %v170 = vld [vmem:[#allocation5 + $0x44] sm:$0xf]
    %v171 = vld [vmem:[#allocation5 + $0x48] sm:$0xff]
    %v172 = vld [vmem:[#allocation5 + $0x50] sm:$0xf]
    %v173 = vld [vmem:[#allocation5 + $0x54] sm:$0xff]
    %v174 = vld [vmem:[#allocation5 + $0x5c] sm:$0xf]
    %v175 = vld [vmem:[#allocation5 + $0x60] sm:$0xff]
    %v176 = vld [vmem:[#allocation5 + $0x68] sm:$0xf]
    %v177 = vld [vmem:[#allocation5 + $0x6c] sm:$0xff]
    %v178 = vld [vmem:[#allocation5 + $0x74] sm:$0xf]
    %v179 = vld [vmem:[#allocation5 + $0x78] sm:$0xff]
    %v180 = vld [vmem:[#allocation5 + $0x80] sm:$0xf]
    %v181 = vld [vmem:[#allocation5 + $0x84] sm:$0xff]
    %v182 = vld [vmem:[#allocation5 + $0x8c] sm:$0xf]
    %v183 = vld [vmem:[#allocation5 + $0x90] sm:$0xff]
    %v184 = vld [vmem:[#allocation5 + $0x98] sm:$0xf]
    %v185 = vld [vmem:[#allocation5 + $0x9c] sm:$0xff]
    %v186 = vld [vmem:[#allocation5 + $0xa4] sm:$0xf]
    %v187 = vld [vmem:[#allocation5 + $0xa8] sm:$0xff]
    %v188 = vld [vmem:[#allocation5 + $0xb0] sm:$0xf]
    %v189 = vld [vmem:[#allocation5 + $0xb4] sm:$0xff]
    %v190 = vld [vmem:[#allocation5 + $0xbc] sm:$0xf]
    %v191 = vld [vmem:[#allocation7] sm:$0x7]
    %v193 = vlaneseq
    %v194 = vshrl.u32 %v193, 7
    %v195 = vsub.s32 0, %v194
    %v196 = vrot.slane %v191, %v195
    %v197 = vlaneseq
    %v198 = vshrl.u32 %v197, 7
    %v199 = vsub.s32 1, %v198
    %v200 = vrot.slane %v191, %v199
    %v201 = vlaneseq
    %v202 = vshrl.u32 %v201, 7
    %v203 = vsub.s32 2, %v202
    %v204 = vrot.slane %v191, %v203
    %v240 = vunpack.c.l.b16 %v159
    %v241 = vunpack.c.h.b16 %v159
    %v242 = vunpack.c.l.b16 %v160
    %v243 = vunpack.c.l.b16 %v161
    %v244 = vunpack.c.h.b16 %v161
    %v245 = vunpack.c.l.b16 %v162
    %v246 = vunpack.c.l.b16 %v163
    %v247 = vunpack.c.h.b16 %v163
    %v248 = vunpack.c.l.b16 %v164
    %v249 = vunpack.c.l.b16 %v165
    %v250 = vunpack.c.h.b16 %v165
    %v251 = vunpack.c.l.b16 %v166
    %v252 = vunpack.c.l.b16 %v167
    %v253 = vunpack.c.h.b16 %v167
    %v254 = vunpack.c.l.b16 %v168
    %v255 = vunpack.c.l.b16 %v169
    %v256 = vunpack.c.h.b16 %v169
    %v257 = vunpack.c.l.b16 %v170
    %v258 = vunpack.c.l.b16 %v171
    %v259 = vunpack.c.h.b16 %v171
    %v260 = vunpack.c.l.b16 %v172
    %v261 = vunpack.c.l.b16 %v173
    %v262 = vunpack.c.h.b16 %v173
    %v263 = vunpack.c.l.b16 %v174
    %v264 = vunpack.c.l.b16 %v175
    %v265 = vunpack.c.h.b16 %v175
    %v266 = vunpack.c.l.b16 %v176
    %v267 = vunpack.c.l.b16 %v177
    %v268 = vunpack.c.h.b16 %v177
    %v269 = vunpack.c.l.b16 %v178
    %v270 = vunpack.c.l.b16 %v179
    %v271 = vunpack.c.h.b16 %v179
    %v272 = vunpack.c.l.b16 %v180
    %v273 = vunpack.c.l.b16 %v181
    %v274 = vunpack.c.h.b16 %v181
    %v275 = vunpack.c.l.b16 %v182
    %v276 = vunpack.c.l.b16 %v183
    %v277 = vunpack.c.h.b16 %v183
    %v278 = vunpack.c.l.b16 %v184
    %v279 = vunpack.c.l.b16 %v185
    %v280 = vunpack.c.h.b16 %v185
    %v281 = vunpack.c.l.b16 %v186
    %v282 = vunpack.c.l.b16 %v187
    %v283 = vunpack.c.h.b16 %v187
    %v284 = vunpack.c.l.b16 %v188
    %v285 = vunpack.c.l.b16 %v189
    %v286 = vunpack.c.h.b16 %v189
    %v287 = vunpack.c.l.b16 %v190
    %v288 = vpack.c.b16 %v243, %v240
    %v289 = vpack.c.b16 %v244, %v241
    %v290 = vpack.c.b16 %v245, %v242
    %v291 = vpack.c.b16 %v249, %v246
    %v292 = vpack.c.b16 %v250, %v247
    %v293 = vpack.c.b16 %v251, %v248
    %v294 = vpack.c.b16 %v255, %v252
    %v295 = vpack.c.b16 %v256, %v253
    %v296 = vpack.c.b16 %v257, %v254
    %v297 = vpack.c.b16 %v261, %v258
    %v298 = vpack.c.b16 %v262, %v259
    %v299 = vpack.c.b16 %v263, %v260
    %v300 = vpack.c.b16 %v267, %v264
    %v301 = vpack.c.b16 %v268, %v265
    %v302 = vpack.c.b16 %v269, %v266
    %v303 = vpack.c.b16 %v273, %v270
    %v304 = vpack.c.b16 %v274, %v271
    %v305 = vpack.c.b16 %v275, %v272
    %v306 = vpack.c.b16 %v279, %v276
    %v307 = vpack.c.b16 %v280, %v277
    %v308 = vpack.c.b16 %v281, %v278
    %v309 = vpack.c.b16 %v285, %v282
    %v310 = vpack.c.b16 %v286, %v283
    %v311 = vpack.c.b16 %v287, %v284
    %336 = vmatprep.subr.bf16.mxu0 %v289
    %337 = vmatpush1.bf16.msra.mxu0 %v288
    %338 = vmatprep.subr.bf16.mxu0 %v292
    %339 = vmatpush1.bf16.msra.mxu0 %v291
    %340 = vmatprep.subr.bf16.mxu0 %v295
    %341 = vmatpush1.bf16.msra.mxu0 %v294
    %342 = vmatprep.subr.bf16.mxu0 %v298
    %343 = vmatpush1.bf16.msra.mxu0 %v297
    %344 = vmatprep.subr.bf16.mxu0 %v301
    %345 = vmatpush1.bf16.msra.mxu0 %v300
    %346 = vmatprep.subr.bf16.mxu0 %v304
    %347 = vmatpush1.bf16.msra.mxu0 %v303
    %348 = vmatprep.subr.bf16.mxu0 %v307
    %349 = vmatpush1.bf16.msra.mxu0 %v306
    %350 = vmatprep.subr.bf16.mxu0 %v310
    %351 = vmatpush1.bf16.msra.mxu0 %v309
    %352 = vmatprep.subr.bf16.mxu0 0
    %353 = vmatpush1.bf16.msra.mxu0 0
    %354 = vmatprep.subr.bf16.mxu0 0
    %355 = vmatpush1.bf16.msra.mxu0 0
    %356 = vmatprep.subr.bf16.mxu0 0
    %357 = vmatpush1.bf16.msra.mxu0 0
    %358 = vmatprep.subr.bf16.mxu0 0
    %359 = vmatpush1.bf16.msra.mxu0 0
    %360 = vmatprep.subr.bf16.mxu0 0
    %361 = vmatpush1.bf16.msra.mxu0 0
    %362 = vmatprep.subr.bf16.mxu0 0
    %363 = vmatpush1.bf16.msra.mxu0 0
    %364 = vmatprep.subr.bf16.mxu0 0
    %365 = vmatpush1.bf16.msra.mxu0 0
    %366 = vmatprep.subr.bf16.mxu0 0
    %367 = vmatpush1.bf16.msra.mxu0 0
    %368 = vmatprep.mubr.bf16.mxu0 0
    %369 = vmatmul.mubr.bf16.gmra.mrb[0].mxu0 %v158
    %v370 = vpop.f32.mrb[0].mxu0
    %v371 = vadd.f32 %v196, %v370
    %v372 = vpop.f32.mrb[0].mxu0
    %v373 = vadd.f32 %v200, %v372
    %v374 = vpop.f32.mrb[0].mxu0
    %v375 = vadd.f32 %v196, %v374
    %v376 = vpop.f32.mrb[0].mxu0
    %v377 = vadd.f32 %v200, %v376
    %378 = vdwg.mxu0
    %379 = vmatprep.subr.bf16.mxu0 0
    %380 = vmatpush1.bf16.msra.mxu0 %v290
    %381 = vmatprep.subr.bf16.mxu0 0
    %382 = vmatpush1.bf16.msra.mxu0 %v293
    %383 = vmatprep.subr.bf16.mxu0 0
    %384 = vmatpush1.bf16.msra.mxu0 %v296
    %385 = vmatprep.subr.bf16.mxu0 0
    %386 = vmatpush1.bf16.msra.mxu0 %v299
    %387 = vmatprep.subr.bf16.mxu0 0
    %388 = vmatpush1.bf16.msra.mxu0 %v302
    %389 = vmatprep.subr.bf16.mxu0 0
    %390 = vmatpush1.bf16.msra.mxu0 %v305
    %391 = vmatprep.subr.bf16.mxu0 0
    %392 = vmatpush1.bf16.msra.mxu0 %v308
    %393 = vmatprep.subr.bf16.mxu0 0
    %394 = vmatpush1.bf16.msra.mxu0 %v311
    %395 = vmatprep.subr.bf16.mxu0 0
    %396 = vmatpush1.bf16.msra.mxu0 0
    %397 = vmatprep.subr.bf16.mxu0 0
    %398 = vmatpush1.bf16.msra.mxu0 0
    %399 = vmatprep.subr.bf16.mxu0 0
    %400 = vmatpush1.bf16.msra.mxu0 0
    %401 = vmatprep.subr.bf16.mxu0 0
    %402 = vmatpush1.bf16.msra.mxu0 0
    %403 = vmatprep.subr.bf16.mxu0 0
    %404 = vmatpush1.bf16.msra.mxu0 0
    %405 = vmatprep.subr.bf16.mxu0 0
    %406 = vmatpush1.bf16.msra.mxu0 0
    %407 = vmatprep.subr.bf16.mxu0 0
    %408 = vmatpush1.bf16.msra.mxu0 0
    %409 = vmatprep.subr.bf16.mxu0 0
    %410 = vmatpush1.bf16.msra.mxu0 0
    %411 = vmatprep.mubr.bf16.mxu0 0
    %412 = vmatmul.mubr.bf16.gmra.mrb[0].mxu0 %v158
    %v413 = vpop.f32.mrb[0].mxu0
    %v414 = vadd.f32 %v204, %v413
    %v415 = vpop.f32.mrb[0].mxu0
    %v416 = vpop.f32.mrb[0].mxu0
    %v417 = vadd.f32 %v204, %v416
    %v418 = vpop.f32.mrb[0].mxu0
    %419 = vdwg.mxu0
    %v420 = vpack.c.bf16 %v375, %v371
    %v421 = vpack.c.bf16 %v377, %v373
    %v422 = vpack.c.bf16 %v417, %v414
    %v424 = vunpack.c.l.b16 %v420
    %v425 = vunpack.c.h.b16 %v420
    %v426 = vpack.c.b16 %v424, %v424
    %v427 = vpack.c.b16 %v425, %v425
    %v429 = vunpack.c.l.b16 %v421
    %v430 = vunpack.c.h.b16 %v421
    %v431 = vpack.c.b16 %v429, %v429
    %v432 = vpack.c.b16 %v430, %v430
    %v434 = vunpack.c.l.b16 %v422
    %v435 = vunpack.c.h.b16 %v422
    %v436 = vpack.c.b16 %v434, %v434
    %v437 = vpack.c.b16 %v435, %v435
    %vm438 = vcmask 64512
    %v440 = vsel %vm438, %v426, 0
    %v443 = vsel %vm438, %v431, 0
    %445 = vmatprep.subr.bf16.mxu0 0
    %446 = vmatpush1.bf16.xpose.msra.mxu0 %v443
    %447 = vmatprep.subr.bf16.mxu0 0
    %448 = vmatpush1.bf16.xpose.msra.mxu0 0
    %449 = vmatprep.subr.bf16.mxu0 0
    %450 = vmatpush1.bf16.xpose.msra.mxu0 0
    %451 = vmatprep.subr.bf16.mxu0 0
    %452 = vmatpush1.bf16.xpose.msra.mxu0 0
    %453 = vmatprep.subr.bf16.mxu0 0
    %454 = vmatpush1.bf16.xpose.msra.mxu0 0
    %455 = vmatprep.subr.bf16.mxu0 0
    %456 = vmatpush1.bf16.xpose.msra.mxu0 0
    %457 = vmatprep.subr.bf16.mxu0 0
    %458 = vmatpush1.bf16.xpose.msra.mxu0 0
    %459 = vmatprep.subr.bf16.mxu0 0
    %460 = vmatpush1.bf16.xpose.msra.mxu0 0
    %461 = vmatprep.subr.bf16.mxu0 0
    %462 = vmatpush1.bf16.xpose.msra.mxu0 0
    %463 = vmatprep.subr.bf16.mxu0 0
    %464 = vmatpush1.bf16.xpose.msra.mxu0 0
    %465 = vmatprep.subr.bf16.mxu0 0
    %466 = vmatpush1.bf16.xpose.msra.mxu0 0
    %467 = vmatprep.subr.bf16.mxu0 0
    %468 = vmatpush1.bf16.xpose.msra.mxu0 0
    %469 = vmatprep.subr.bf16.mxu0 0
    %470 = vmatpush1.bf16.xpose.msra.mxu0 0
    %471 = vmatprep.subr.bf16.mxu0 0
    %472 = vmatpush1.bf16.xpose.msra.mxu0 0
    %473 = vmatprep.subr.bf16.mxu0 0
    %474 = vmatpush1.bf16.xpose.msra.mxu0 0
    %475 = vmatprep.subr.bf16.mxu0 0
    %476 = vmatpush1.bf16.xpose.msra.mxu0 0
    %477 = vmatprep.mubr.bf16.mxu0 0
    %478 = vmatmul.mubr.bf16.gmra.mrb[0].mxu0 %v440
    %v479 = vpop.f32.mrb[0].mxu0
    %v480 = vadd.f32 0.0, %v479
    %v481 = vpop.f32.mrb[0].mxu0
    %v482 = vpop.f32.mrb[0].mxu0
    %v483 = vpop.f32.mrb[0].mxu0
    %484 = vdwg.mxu0
    %v486 = vsel %vm438, %v427, 0
    %v489 = vsel %vm438, %v432, 0
    %491 = vmatprep.subr.bf16.mxu0 0
    %492 = vmatpush1.bf16.xpose.msra.mxu0 %v489
    %493 = vmatprep.subr.bf16.mxu0 0
    %494 = vmatpush1.bf16.xpose.msra.mxu0 0
    %495 = vmatprep.subr.bf16.mxu0 0
    %496 = vmatpush1.bf16.xpose.msra.mxu0 0
    %497 = vmatprep.subr.bf16.mxu0 0
    %498 = vmatpush1.bf16.xpose.msra.mxu0 0
    %499 = vmatprep.subr.bf16.mxu0 0
    %500 = vmatpush1.bf16.xpose.msra.mxu0 0
    %501 = vmatprep.subr.bf16.mxu0 0
    %502 = vmatpush1.bf16.xpose.msra.mxu0 0
    %503 = vmatprep.subr.bf16.mxu0 0
    %504 = vmatpush1.bf16.xpose.msra.mxu0 0
    %505 = vmatprep.subr.bf16.mxu0 0
    %506 = vmatpush1.bf16.xpose.msra.mxu0 0
    %507 = vmatprep.subr.bf16.mxu0 0
    %508 = vmatpush1.bf16.xpose.msra.mxu0 0
    %509 = vmatprep.subr.bf16.mxu0 0
    %510 = vmatpush1.bf16.xpose.msra.mxu0 0
    %511 = vmatprep.subr.bf16.mxu0 0
    %512 = vmatpush1.bf16.xpose.msra.mxu0 0
    %513 = vmatprep.subr.bf16.mxu0 0
    %514 = vmatpush1.bf16.xpose.msra.mxu0 0
    %515 = vmatprep.subr.bf16.mxu0 0
    %516 = vmatpush1.bf16.xpose.msra.mxu0 0
    %517 = vmatprep.subr.bf16.mxu0 0
    %518 = vmatpush1.bf16.xpose.msra.mxu0 0
    %519 = vmatprep.subr.bf16.mxu0 0
    %520 = vmatpush1.bf16.xpose.msra.mxu0 0
    %521 = vmatprep.subr.bf16.mxu0 0
    %522 = vmatpush1.bf16.xpose.msra.mxu0 0
    %523 = vmatprep.mubr.bf16.mxu0 0
    %524 = vmatmul.mubr.bf16.gmra.mrb[0].mxu0 %v486
    %v525 = vpop.f32.mrb[0].mxu0
    %v526 = vadd.f32 0.0, %v525
    %v527 = vpop.f32.mrb[0].mxu0
    %v528 = vpop.f32.mrb[0].mxu0
    %v529 = vpop.f32.mrb[0].mxu0
    %530 = vdwg.mxu0
    %v531 = vsel %vm438, %v480, -inf
    %532 = vmax.xlane.f32.xlu0 %v531
    %v533 = vpop.xlane.xlu0 %532
    %v534 = vsel %vm438, %v526, -inf
    %535 = vmax.xlane.f32.xlu0 %v534
    %v536 = vpop.xlane.xlu0 %535
    %v537 = vsub.f32 %v480, %v533
    %v538 = vsub.f32 %v526, %v536
    %v539 = vmul.f32 %v537, 1.442695
    %v540 = vpow.pop %v539
    %v541 = vmul.f32 %v538, 1.442695
    %v542 = vpow.pop %v541
    %v543 = vsel %vm438, %v540, 0.0
    %544 = vadd.xlane.f32.xlu0 %v543
    %v545 = vpop.xlane.xlu0 %544
    %v546 = vsel %vm438, %v542, 0.0
    %547 = vadd.xlane.f32.xlu0 %v546
    %v548 = vpop.xlane.xlu0 %547
    %v549 = vrcp.pop %v545
    %v550 = vrcp.pop %v548
    %v551 = vmul.f32 %v540, %v549
    %v552 = vmul.f32 %v542, %v550
    %v553 = vpack.c.bf16 %v551, %v551
    %v554 = vpack.c.bf16 %v552, %v552
    %v556 = vsel %vm438, %v553, 0
    %vm558 = vcmask 1043456
    %v560 = vsel %vm558, %v436, 0
    %562 = vmatprep.subr.bf16.mxu0 0
    %563 = vmatpush1.bf16.msra.mxu0 %v560
    %564 = vmatprep.subr.bf16.mxu0 0
    %565 = vmatpush1.bf16.msra.mxu0 0
    %566 = vmatprep.subr.bf16.mxu0 0
    %567 = vmatpush1.bf16.msra.mxu0 0
    %568 = vmatprep.subr.bf16.mxu0 0
    %569 = vmatpush1.bf16.msra.mxu0 0
    %570 = vmatprep.subr.bf16.mxu0 0
    %571 = vmatpush1.bf16.msra.mxu0 0
    %572 = vmatprep.subr.bf16.mxu0 0
    %573 = vmatpush1.bf16.msra.mxu0 0
    %574 = vmatprep.subr.bf16.mxu0 0
    %575 = vmatpush1.bf16.msra.mxu0 0
    %576 = vmatprep.subr.bf16.mxu0 0
    %577 = vmatpush1.bf16.msra.mxu0 0
    %578 = vmatprep.subr.bf16.mxu0 0
    %579 = vmatpush1.bf16.msra.mxu0 0
    %580 = vmatprep.subr.bf16.mxu0 0
    %581 = vmatpush1.bf16.msra.mxu0 0
    %582 = vmatprep.subr.bf16.mxu0 0
    %583 = vmatpush1.bf16.msra.mxu0 0
    %584 = vmatprep.subr.bf16.mxu0 0
    %585 = vmatpush1.bf16.msra.mxu0 0
    %586 = vmatprep.subr.bf16.mxu0 0
    %587 = vmatpush1.bf16.msra.mxu0 0
    %588 = vmatprep.subr.bf16.mxu0 0
    %589 = vmatpush1.bf16.msra.mxu0 0
    %590 = vmatprep.subr.bf16.mxu0 0
    %591 = vmatpush1.bf16.msra.mxu0 0
    %592 = vmatprep.subr.bf16.mxu0 0
    %593 = vmatpush1.bf16.msra.mxu0 0
    %594 = vmatprep.mubr.bf16.mxu0 0
    %595 = vmatmul.mubr.bf16.gmra.mrb[0].mxu0 %v556
    %v596 = vpop.f32.mrb[0].mxu0
    %v597 = vadd.f32 0.0, %v596
    %v598 = vpop.f32.mrb[0].mxu0
    %v599 = vpop.f32.mrb[0].mxu0
    %v600 = vpop.f32.mrb[0].mxu0
    %601 = vdwg.mxu0
    %v603 = vsel %vm438, %v554, 0
    %v606 = vsel %vm558, %v437, 0
    %608 = vmatprep.subr.bf16.mxu0 0
    %609 = vmatpush1.bf16.msra.mxu0 %v606
    %610 = vmatprep.subr.bf16.mxu0 0
    %611 = vmatpush1.bf16.msra.mxu0 0
    %612 = vmatprep.subr.bf16.mxu0 0
    %613 = vmatpush1.bf16.msra.mxu0 0
    %614 = vmatprep.subr.bf16.mxu0 0
    %615 = vmatpush1.bf16.msra.mxu0 0
    %616 = vmatprep.subr.bf16.mxu0 0
    %617 = vmatpush1.bf16.msra.mxu0 0
    %618 = vmatprep.subr.bf16.mxu0 0
    %619 = vmatpush1.bf16.msra.mxu0 0
    %620 = vmatprep.subr.bf16.mxu0 0
    %621 = vmatpush1.bf16.msra.mxu0 0
    %622 = vmatprep.subr.bf16.mxu0 0
    %623 = vmatpush1.bf16.msra.mxu0 0
    %624 = vmatprep.subr.bf16.mxu0 0
    %625 = vmatpush1.bf16.msra.mxu0 0
    %626 = vmatprep.subr.bf16.mxu0 0
    %627 = vmatpush1.bf16.msra.mxu0 0
    %628 = vmatprep.subr.bf16.mxu0 0
    %629 = vmatpush1.bf16.msra.mxu0 0
    %630 = vmatprep.subr.bf16.mxu0 0
    %631 = vmatpush1.bf16.msra.mxu0 0
    %632 = vmatprep.subr.bf16.mxu0 0
    %633 = vmatpush1.bf16.msra.mxu0 0
    %634 = vmatprep.subr.bf16.mxu0 0
    %635 = vmatpush1.bf16.msra.mxu0 0
    %636 = vmatprep.subr.bf16.mxu0 0
    %637 = vmatpush1.bf16.msra.mxu0 0
    %638 = vmatprep.subr.bf16.mxu0 0
    %639 = vmatpush1.bf16.msra.mxu0 0
    %640 = vmatprep.mubr.bf16.mxu0 0
    %641 = vmatmul.mubr.bf16.gmra.mrb[0].mxu0 %v603
    %v642 = vpop.f32.mrb[0].mxu0
    %v643 = vadd.f32 0.0, %v642
    %v644 = vpop.f32.mrb[0].mxu0
    %v645 = vpop.f32.mrb[0].mxu0
    %v646 = vpop.f32.mrb[0].mxu0
    %647 = vdwg.mxu0
    %v648 = vpack.c.bf16 %v643, %v597
    %v649 = vld [vmem:[%s5] sm:$0xf]
    %650 = vrot.lane.b32.xlu0 %v426, 120
    %v651 = vpop.permute.xlu0 %650
    %652 = vrot.lane.b32.xlu0 %v431, 120
    %v653 = vpop.permute.xlu0 %652
    %v655 = vsel %vm438, %v651, 0
    %v658 = vsel %vm438, %v653, 0
    %660 = vmatprep.subr.bf16.mxu0 0
    %661 = vmatpush1.bf16.xpose.msra.mxu0 %v658
    %662 = vmatprep.subr.bf16.mxu0 0
    %663 = vmatpush1.bf16.xpose.msra.mxu0 0
    %664 = vmatprep.subr.bf16.mxu0 0
    %665 = vmatpush1.bf16.xpose.msra.mxu0 0
    %666 = vmatprep.subr.bf16.mxu0 0
    %667 = vmatpush1.bf16.xpose.msra.mxu0 0
    %668 = vmatprep.subr.bf16.mxu0 0
    %669 = vmatpush1.bf16.xpose.msra.mxu0 0
    %670 = vmatprep.subr.bf16.mxu0 0
    %671 = vmatpush1.bf16.xpose.msra.mxu0 0
    %672 = vmatprep.subr.bf16.mxu0 0
    %673 = vmatpush1.bf16.xpose.msra.mxu0 0
    %674 = vmatprep.subr.bf16.mxu0 0
    %675 = vmatpush1.bf16.xpose.msra.mxu0 0
    %676 = vmatprep.subr.bf16.mxu0 0
    %677 = vmatpush1.bf16.xpose.msra.mxu0 0
    %678 = vmatprep.subr.bf16.mxu0 0
    %679 = vmatpush1.bf16.xpose.msra.mxu0 0
    %680 = vmatprep.subr.bf16.mxu0 0
    %681 = vmatpush1.bf16.xpose.msra.mxu0 0
    %682 = vmatprep.subr.bf16.mxu0 0
    %683 = vmatpush1.bf16.xpose.msra.mxu0 0
    %684 = vmatprep.subr.bf16.mxu0 0
    %685 = vmatpush1.bf16.xpose.msra.mxu0 0
    %686 = vmatprep.subr.bf16.mxu0 0
    %687 = vmatpush1.bf16.xpose.msra.mxu0 0
    %688 = vmatprep.subr.bf16.mxu0 0
    %689 = vmatpush1.bf16.xpose.msra.mxu0 0
    %690 = vmatprep.subr.bf16.mxu0 0
    %691 = vmatpush1.bf16.xpose.msra.mxu0 0
    %692 = vmatprep.mubr.bf16.mxu0 0
    %693 = vmatmul.mubr.bf16.gmra.mrb[0].mxu0 %v655
    %v694 = vpop.f32.mrb[0].mxu0
    %v695 = vadd.f32 0.0, %v694
    %v696 = vpop.f32.mrb[0].mxu0
    %v697 = vpop.f32.mrb[0].mxu0
    %v698 = vpop.f32.mrb[0].mxu0
    %699 = vdwg.mxu0
    %700 = vrot.lane.b32.xlu0 %v427, 120
    %v701 = vpop.permute.xlu0 %700
    %702 = vrot.lane.b32.xlu0 %v432, 120
    %v703 = vpop.permute.xlu0 %702
    %v705 = vsel %vm438, %v701, 0
    %v708 = vsel %vm438, %v703, 0
    %710 = vmatprep.subr.bf16.mxu0 0
    %711 = vmatpush1.bf16.xpose.msra.mxu0 %v708
    %712 = vmatprep.subr.bf16.mxu0 0
    %713 = vmatpush1.bf16.xpose.msra.mxu0 0
    %714 = vmatprep.subr.bf16.mxu0 0
    %715 = vmatpush1.bf16.xpose.msra.mxu0 0
    %716 = vmatprep.subr.bf16.mxu0 0
    %717 = vmatpush1.bf16.xpose.msra.mxu0 0
    %718 = vmatprep.subr.bf16.mxu0 0
    %719 = vmatpush1.bf16.xpose.msra.mxu0 0
    %720 = vmatprep.subr.bf16.mxu0 0
    %721 = vmatpush1.bf16.xpose.msra.mxu0 0
    %722 = vmatprep.subr.bf16.mxu0 0
    %723 = vmatpush1.bf16.xpose.msra.mxu0 0
    %724 = vmatprep.subr.bf16.mxu0 0
    %725 = vmatpush1.bf16.xpose.msra.mxu0 0
    %726 = vmatprep.subr.bf16.mxu0 0
    %727 = vmatpush1.bf16.xpose.msra.mxu0 0
    %728 = vmatprep.subr.bf16.mxu0 0
    %729 = vmatpush1.bf16.xpose.msra.mxu0 0
    %730 = vmatprep.subr.bf16.mxu0 0
    %731 = vmatpush1.bf16.xpose.msra.mxu0 0
    %732 = vmatprep.subr.bf16.mxu0 0
    %733 = vmatpush1.bf16.xpose.msra.mxu0 0
    %734 = vmatprep.subr.bf16.mxu0 0
    %735 = vmatpush1.bf16.xpose.msra.mxu0 0
    %736 = vmatprep.subr.bf16.mxu0 0
    %737 = vmatpush1.bf16.xpose.msra.mxu0 0
    %738 = vmatprep.subr.bf16.mxu0 0
    %739 = vmatpush1.bf16.xpose.msra.mxu0 0
    %740 = vmatprep.subr.bf16.mxu0 0
    %741 = vmatpush1.bf16.xpose.msra.mxu0 0
    %742 = vmatprep.mubr.bf16.mxu0 0
    %743 = vmatmul.mubr.bf16.gmra.mrb[0].mxu0 %v705
    %v744 = vpop.f32.mrb[0].mxu0
    %v745 = vadd.f32 0.0, %v744
    %v746 = vpop.f32.mrb[0].mxu0
    %v747 = vpop.f32.mrb[0].mxu0
    %v748 = vpop.f32.mrb[0].mxu0
    %749 = vdwg.mxu0
    %v750 = vsel %vm438, %v695, -inf
    %751 = vmax.xlane.f32.xlu0 %v750
    %v752 = vpop.xlane.xlu0 %751
    %v753 = vsel %vm438, %v745, -inf
    %754 = vmax.xlane.f32.xlu0 %v753
    %v755 = vpop.xlane.xlu0 %754
    %v756 = vsub.f32 %v695, %v752
    %v757 = vsub.f32 %v745, %v755
    %v758 = vmul.f32 %v756, 1.442695
    %v759 = vpow.pop %v758
    %v760 = vmul.f32 %v757, 1.442695
    %v761 = vpow.pop %v760
    %v762 = vsel %vm438, %v759, 0.0
    %763 = vadd.xlane.f32.xlu0 %v762
    %v764 = vpop.xlane.xlu0 %763
    %v765 = vsel %vm438, %v761, 0.0
    %766 = vadd.xlane.f32.xlu0 %v765
    %v767 = vpop.xlane.xlu0 %766
    %v768 = vrcp.pop %v764
    %v769 = vrcp.pop %v767
    %v770 = vmul.f32 %v759, %v768
    %v771 = vmul.f32 %v761, %v769
    %v772 = vpack.c.bf16 %v770, %v770
    %v773 = vpack.c.bf16 %v771, %v771
    %774 = vrot.lane.b32.xlu0 %v436, 120
    %v775 = vpop.permute.xlu0 %774
    %v777 = vsel %vm438, %v772, 0
    %v780 = vsel %vm558, %v775, 0
    %782 = vmatprep.subr.bf16.mxu0 0
    %783 = vmatpush1.bf16.msra.mxu0 %v780
    %784 = vmatprep.subr.bf16.mxu0 0
    %785 = vmatpush1.bf16.msra.mxu0 0
    %786 = vmatprep.subr.bf16.mxu0 0
    %787 = vmatpush1.bf16.msra.mxu0 0
    %788 = vmatprep.subr.bf16.mxu0 0
    %789 = vmatpush1.bf16.msra.mxu0 0
    %790 = vmatprep.subr.bf16.mxu0 0
    %791 = vmatpush1.bf16.msra.mxu0 0
    %792 = vmatprep.subr.bf16.mxu0 0
    %793 = vmatpush1.bf16.msra.mxu0 0
    %794 = vmatprep.subr.bf16.mxu0 0
    %795 = vmatpush1.bf16.msra.mxu0 0
    %796 = vmatprep.subr.bf16.mxu0 0
    %797 = vmatpush1.bf16.msra.mxu0 0
    %798 = vmatprep.subr.bf16.mxu0 0
    %799 = vmatpush1.bf16.msra.mxu0 0
    %800 = vmatprep.subr.bf16.mxu0 0
    %801 = vmatpush1.bf16.msra.mxu0 0
    %802 = vmatprep.subr.bf16.mxu0 0
    %803 = vmatpush1.bf16.msra.mxu0 0
    %804 = vmatprep.subr.bf16.mxu0 0
    %805 = vmatpush1.bf16.msra.mxu0 0
    %806 = vmatprep.subr.bf16.mxu0 0
    %807 = vmatpush1.bf16.msra.mxu0 0
    %808 = vmatprep.subr.bf16.mxu0 0
    %809 = vmatpush1.bf16.msra.mxu0 0
    %810 = vmatprep.subr.bf16.mxu0 0
    %811 = vmatpush1.bf16.msra.mxu0 0
    %812 = vmatprep.subr.bf16.mxu0 0
    %813 = vmatpush1.bf16.msra.mxu0 0
    %814 = vmatprep.mubr.bf16.mxu0 0
    %815 = vmatmul.mubr.bf16.gmra.mrb[0].mxu0 %v777
    %v816 = vpop.f32.mrb[0].mxu0
    %v817 = vadd.f32 0.0, %v816
    %v818 = vpop.f32.mrb[0].mxu0
    %v819 = vpop.f32.mrb[0].mxu0
    %v820 = vpop.f32.mrb[0].mxu0
    %821 = vdwg.mxu0
    %822 = vrot.lane.b32.xlu0 %v437, 120
    %v823 = vpop.permute.xlu0 %822
    %v825 = vsel %vm438, %v773, 0
    %v828 = vsel %vm558, %v823, 0
    %830 = vmatprep.subr.bf16.mxu0 0
    %831 = vmatpush1.bf16.msra.mxu0 %v828
    %832 = vmatprep.subr.bf16.mxu0 0
    %833 = vmatpush1.bf16.msra.mxu0 0
    %834 = vmatprep.subr.bf16.mxu0 0
    %835 = vmatpush1.bf16.msra.mxu0 0
    %836 = vmatprep.subr.bf16.mxu0 0
    %837 = vmatpush1.bf16.msra.mxu0 0
    %838 = vmatprep.subr.bf16.mxu0 0
    %839 = vmatpush1.bf16.msra.mxu0 0
    %840 = vmatprep.subr.bf16.mxu0 0
    %841 = vmatpush1.bf16.msra.mxu0 0
    %842 = vmatprep.subr.bf16.mxu0 0
    %843 = vmatpush1.bf16.msra.mxu0 0
    %844 = vmatprep.subr.bf16.mxu0 0
    %845 = vmatpush1.bf16.msra.mxu0 0
    %846 = vmatprep.subr.bf16.mxu0 0
    %847 = vmatpush1.bf16.msra.mxu0 0
    %848 = vmatprep.subr.bf16.mxu0 0
    %849 = vmatpush1.bf16.msra.mxu0 0
    %850 = vmatprep.subr.bf16.mxu0 0
    %851 = vmatpush1.bf16.msra.mxu0 0
    %852 = vmatprep.subr.bf16.mxu0 0
    %853 = vmatpush1.bf16.msra.mxu0 0
    %854 = vmatprep.subr.bf16.mxu0 0
    %855 = vmatpush1.bf16.msra.mxu0 0
    %856 = vmatprep.subr.bf16.mxu0 0
    %857 = vmatpush1.bf16.msra.mxu0 0
    %858 = vmatprep.subr.bf16.mxu0 0
    %859 = vmatpush1.bf16.msra.mxu0 0
    %860 = vmatprep.subr.bf16.mxu0 0
    %861 = vmatpush1.bf16.msra.mxu0 0
    %862 = vmatprep.mubr.bf16.mxu0 0
    %863 = vmatmul.mubr.bf16.gmra.mrb[0].mxu0 %v825
    %v864 = vpop.f32.mrb[0].mxu0
    %v865 = vadd.f32 0.0, %v864
    %v866 = vpop.f32.mrb[0].mxu0
    %v867 = vpop.f32.mrb[0].mxu0
    %v868 = vpop.f32.mrb[0].mxu0
    %869 = vdwg.mxu0
    %v870 = vpack.c.bf16 %v865, %v817
    %s871 = scalar_lea.vmem %s5, 4
    %v872 = vld [vmem:[%s871] sm:$0xf]
    %v874 = vsel %vm438, %v870, 0
    %v877 = vsel %vm558, %v872, 0
    %879 = vmatprep.subr.bf16.mxu0 0
    %880 = vmatpush1.bf16.msra.mxu0 %v877
    %881 = vmatprep.subr.bf16.mxu0 0
    %882 = vmatpush1.bf16.msra.mxu0 0
    %883 = vmatprep.subr.bf16.mxu0 0
    %884 = vmatpush1.bf16.msra.mxu0 0
    %885 = vmatprep.subr.bf16.mxu0 0
    %886 = vmatpush1.bf16.msra.mxu0 0
    %887 = vmatprep.subr.bf16.mxu0 0
    %888 = vmatpush1.bf16.msra.mxu0 0
    %889 = vmatprep.subr.bf16.mxu0 0
    %890 = vmatpush1.bf16.msra.mxu0 0
    %891 = vmatprep.subr.bf16.mxu0 0
    %892 = vmatpush1.bf16.msra.mxu0 0
    %893 = vmatprep.subr.bf16.mxu0 0
    %894 = vmatpush1.bf16.msra.mxu0 0
    %895 = vmatprep.subr.bf16.mxu0 0
    %896 = vmatpush1.bf16.msra.mxu0 0
    %897 = vmatprep.subr.bf16.mxu0 0
    %898 = vmatpush1.bf16.msra.mxu0 0
    %899 = vmatprep.subr.bf16.mxu0 0
    %900 = vmatpush1.bf16.msra.mxu0 0
    %901 = vmatprep.subr.bf16.mxu0 0
    %902 = vmatpush1.bf16.msra.mxu0 0
    %903 = vmatprep.subr.bf16.mxu0 0
    %904 = vmatpush1.bf16.msra.mxu0 0
    %905 = vmatprep.subr.bf16.mxu0 0
    %906 = vmatpush1.bf16.msra.mxu0 0
    %907 = vmatprep.subr.bf16.mxu0 0
    %908 = vmatpush1.bf16.msra.mxu0 0
    %909 = vmatprep.subr.bf16.mxu0 0
    %910 = vmatpush1.bf16.msra.mxu0 0
    %911 = vmatprep.mubr.bf16.mxu0 0
    %912 = vmatmul.mubr.bf16.gmra.mrb[0].mxu0 %v874
    %v913 = vpop.f32.mrb[0].mxu0
    %v914 = vadd.f32 0.0, %v913
    %v915 = vpop.f32.mrb[0].mxu0
    %v916 = vpop.f32.mrb[0].mxu0
    %v917 = vadd.f32 0.0, %v916
    %v918 = vpop.f32.mrb[0].mxu0
    %919 = vdwg.mxu0
    %v921 = vsel %vm438, %v648, 0
    %v924 = vsel %vm558, %v649, 0
    %926 = vmatprep.subr.bf16.mxu0 0
    %927 = vmatpush1.bf16.msra.mxu0 %v924
    %928 = vmatprep.subr.bf16.mxu0 0
    %929 = vmatpush1.bf16.msra.mxu0 0
    %930 = vmatprep.subr.bf16.mxu0 0
    %931 = vmatpush1.bf16.msra.mxu0 0
    %932 = vmatprep.subr.bf16.mxu0 0
    %933 = vmatpush1.bf16.msra.mxu0 0
    %934 = vmatprep.subr.bf16.mxu0 0
    %935 = vmatpush1.bf16.msra.mxu0 0
    %936 = vmatprep.subr.bf16.mxu0 0
    %937 = vmatpush1.bf16.msra.mxu0 0
    %938 = vmatprep.subr.bf16.mxu0 0
    %939 = vmatpush1.bf16.msra.mxu0 0
    %940 = vmatprep.subr.bf16.mxu0 0
    %941 = vmatpush1.bf16.msra.mxu0 0
    %942 = vmatprep.subr.bf16.mxu0 0
    %943 = vmatpush1.bf16.msra.mxu0 0
    %944 = vmatprep.subr.bf16.mxu0 0
    %945 = vmatpush1.bf16.msra.mxu0 0
    %946 = vmatprep.subr.bf16.mxu0 0
    %947 = vmatpush1.bf16.msra.mxu0 0
    %948 = vmatprep.subr.bf16.mxu0 0
    %949 = vmatpush1.bf16.msra.mxu0 0
    %950 = vmatprep.subr.bf16.mxu0 0
    %951 = vmatpush1.bf16.msra.mxu0 0
    %952 = vmatprep.subr.bf16.mxu0 0
    %953 = vmatpush1.bf16.msra.mxu0 0
    %954 = vmatprep.subr.bf16.mxu0 0
    %955 = vmatpush1.bf16.msra.mxu0 0
    %956 = vmatprep.subr.bf16.mxu0 0
    %957 = vmatpush1.bf16.msra.mxu0 0
    %958 = vmatprep.mubr.bf16.mxu0 0
    %959 = vmatmul.mubr.bf16.gmra.mrb[0].mxu0 %v921
    %v960 = vpop.f32.mrb[0].mxu0
    %v961 = vadd.f32 %v914, %v960
    %v962 = vpop.f32.mrb[0].mxu0
    %v963 = vpop.f32.mrb[0].mxu0
    %v964 = vadd.f32 %v917, %v963
    %v965 = vpop.f32.mrb[0].mxu0
    %966 = vdwg.mxu0
    %967 = vrot.lane.b32.xlu0 %v426, 112
    %v968 = vpop.permute.xlu0 %967
    %969 = vrot.lane.b32.xlu0 %v431, 112
    %v970 = vpop.permute.xlu0 %969
    %v972 = vsel %vm438, %v968, 0
    %v975 = vsel %vm438, %v970, 0
    %977 = vmatprep.subr.bf16.mxu0 0
    %978 = vmatpush1.bf16.xpose.msra.mxu0 %v975
    %979 = vmatprep.subr.bf16.mxu0 0
    %980 = vmatpush1.bf16.xpose.msra.mxu0 0
    %981 = vmatprep.subr.bf16.mxu0 0
    %982 = vmatpush1.bf16.xpose.msra.mxu0 0
    %983 = vmatprep.subr.bf16.mxu0 0
    %984 = vmatpush1.bf16.xpose.msra.mxu0 0
    %985 = vmatprep.subr.bf16.mxu0 0
    %986 = vmatpush1.bf16.xpose.msra.mxu0 0
    %987 = vmatprep.subr.bf16.mxu0 0
    %988 = vmatpush1.bf16.xpose.msra.mxu0 0
    %989 = vmatprep.subr.bf16.mxu0 0
    %990 = vmatpush1.bf16.xpose.msra.mxu0 0
    %991 = vmatprep.subr.bf16.mxu0 0
    %992 = vmatpush1.bf16.xpose.msra.mxu0 0
    %993 = vmatprep.subr.bf16.mxu0 0
    %994 = vmatpush1.bf16.xpose.msra.mxu0 0
    %995 = vmatprep.subr.bf16.mxu0 0
    %996 = vmatpush1.bf16.xpose.msra.mxu0 0
    %997 = vmatprep.subr.bf16.mxu0 0
    %998 = vmatpush1.bf16.xpose.msra.mxu0 0
    %999 = vmatprep.subr.bf16.mxu0 0
    %1000 = vmatpush1.bf16.xpose.msra.mxu0 0
    %1001 = vmatprep.subr.bf16.mxu0 0
    %1002 = vmatpush1.bf16.xpose.msra.mxu0 0
    %1003 = vmatprep.subr.bf16.mxu0 0
    %1004 = vmatpush1.bf16.xpose.msra.mxu0 0
    %1005 = vmatprep.subr.bf16.mxu0 0
    %1006 = vmatpush1.bf16.xpose.msra.mxu0 0
    %1007 = vmatprep.subr.bf16.mxu0 0
    %1008 = vmatpush1.bf16.xpose.msra.mxu0 0
    %1009 = vmatprep.mubr.bf16.mxu0 0
    %1010 = vmatmul.mubr.bf16.gmra.mrb[0].mxu0 %v972
    %v1011 = vpop.f32.mrb[0].mxu0
    %v1012 = vadd.f32 0.0, %v1011
    %v1013 = vpop.f32.mrb[0].mxu0
    %v1014 = vpop.f32.mrb[0].mxu0
    %v1015 = vpop.f32.mrb[0].mxu0
    %1016 = vdwg.mxu0
    %1017 = vrot.lane.b32.xlu0 %v427, 112
    %v1018 = vpop.permute.xlu0 %1017
    %1019 = vrot.lane.b32.xlu0 %v432, 112
    %v1020 = vpop.permute.xlu0 %1019
    %v1022 = vsel %vm438, %v1018, 0
    %v1025 = vsel %vm438, %v1020, 0
    %1027 = vmatprep.subr.bf16.mxu0 0
    %1028 = vmatpush1.bf16.xpose.msra.mxu0 %v1025
    %1029 = vmatprep.subr.bf16.mxu0 0
    %1030 = vmatpush1.bf16.xpose.msra.mxu0 0
    %1031 = vmatprep.subr.bf16.mxu0 0
    %1032 = vmatpush1.bf16.xpose.msra.mxu0 0
    %1033 = vmatprep.subr.bf16.mxu0 0
    %1034 = vmatpush1.bf16.xpose.msra.mxu0 0
    %1035 = vmatprep.subr.bf16.mxu0 0
    %1036 = vmatpush1.bf16.xpose.msra.mxu0 0
    %1037 = vmatprep.subr.bf16.mxu0 0
    %1038 = vmatpush1.bf16.xpose.msra.mxu0 0
    %1039 = vmatprep.subr.bf16.mxu0 0
    %1040 = vmatpush1.bf16.xpose.msra.mxu0 0
    %1041 = vmatprep.subr.bf16.mxu0 0
    %1042 = vmatpush1.bf16.xpose.msra.mxu0 0
    %1043 = vmatprep.subr.bf16.mxu0 0
    %1044 = vmatpush1.bf16.xpose.msra.mxu0 0
    %1045 = vmatprep.subr.bf16.mxu0 0
    %1046 = vmatpush1.bf16.xpose.msra.mxu0 0
    %1047 = vmatprep.subr.bf16.mxu0 0
    %1048 = vmatpush1.bf16.xpose.msra.mxu0 0
    %1049 = vmatprep.subr.bf16.mxu0 0
    %1050 = vmatpush1.bf16.xpose.msra.mxu0 0
    %1051 = vmatprep.subr.bf16.mxu0 0
    %1052 = vmatpush1.bf16.xpose.msra.mxu0 0
    %1053 = vmatprep.subr.bf16.mxu0 0
    %1054 = vmatpush1.bf16.xpose.msra.mxu0 0
    %1055 = vmatprep.subr.bf16.mxu0 0
    %1056 = vmatpush1.bf16.xpose.msra.mxu0 0
    %1057 = vmatprep.subr.bf16.mxu0 0
    %1058 = vmatpush1.bf16.xpose.msra.mxu0 0
    %1059 = vmatprep.mubr.bf16.mxu0 0
    %1060 = vmatmul.mubr.bf16.gmra.mrb[0].mxu0 %v1022
    %v1061 = vpop.f32.mrb[0].mxu0
    %v1062 = vadd.f32 0.0, %v1061
    %v1063 = vpop.f32.mrb[0].mxu0
    %v1064 = vpop.f32.mrb[0].mxu0
    %v1065 = vpop.f32.mrb[0].mxu0
    %1066 = vdwg.mxu0
    %v1067 = vsel %vm438, %v1012, -inf
    %1068 = vmax.xlane.f32.xlu0 %v1067
    %v1069 = vpop.xlane.xlu0 %1068
    %v1070 = vsel %vm438, %v1062, -inf
    %1071 = vmax.xlane.f32.xlu0 %v1070
    %v1072 = vpop.xlane.xlu0 %1071
    %v1073 = vsub.f32 %v1012, %v1069
    %v1074 = vsub.f32 %v1062, %v1072
    %v1075 = vmul.f32 %v1073, 1.442695
    %v1076 = vpow.pop %v1075
    %v1077 = vmul.f32 %v1074, 1.442695
    %v1078 = vpow.pop %v1077
    %v1079 = vsel %vm438, %v1076, 0.0
    %1080 = vadd.xlane.f32.xlu0 %v1079
    %v1081 = vpop.xlane.xlu0 %1080
    %v1082 = vsel %vm438, %v1078, 0.0
    %1083 = vadd.xlane.f32.xlu0 %v1082
    %v1084 = vpop.xlane.xlu0 %1083
    %v1085 = vrcp.pop %v1081
    %v1086 = vrcp.pop %v1084
    %v1087 = vmul.f32 %v1076, %v1085
    %v1088 = vmul.f32 %v1078, %v1086
    %v1089 = vpack.c.bf16 %v1087, %v1087
    %v1090 = vpack.c.bf16 %v1088, %v1088
    %1091 = vrot.lane.b32.xlu0 %v436, 112
    %v1092 = vpop.permute.xlu0 %1091
    %v1094 = vsel %vm438, %v1089, 0
    %v1097 = vsel %vm558, %v1092, 0
    %1099 = vmatprep.subr.bf16.mxu0 0
    %1100 = vmatpush1.bf16.msra.mxu0 %v1097
    %1101 = vmatprep.subr.bf16.mxu0 0
    %1102 = vmatpush1.bf16.msra.mxu0 0
    %1103 = vmatprep.subr.bf16.mxu0 0
    %1104 = vmatpush1.bf16.msra.mxu0 0
    %1105 = vmatprep.subr.bf16.mxu0 0
    %1106 = vmatpush1.bf16.msra.mxu0 0
    %1107 = vmatprep.subr.bf16.mxu0 0
    %1108 = vmatpush1.bf16.msra.mxu0 0
    %1109 = vmatprep.subr.bf16.mxu0 0
    %1110 = vmatpush1.bf16.msra.mxu0 0
    %1111 = vmatprep.subr.bf16.mxu0 0
    %1112 = vmatpush1.bf16.msra.mxu0 0
    %1113 = vmatprep.subr.bf16.mxu0 0
    %1114 = vmatpush1.bf16.msra.mxu0 0
    %1115 = vmatprep.subr.bf16.mxu0 0
    %1116 = vmatpush1.bf16.msra.mxu0 0
    %1117 = vmatprep.subr.bf16.mxu0 0
    %1118 = vmatpush1.bf16.msra.mxu0 0
    %1119 = vmatprep.subr.bf16.mxu0 0
    %1120 = vmatpush1.bf16.msra.mxu0 0
    %1121 = vmatprep.subr.bf16.mxu0 0
    %1122 = vmatpush1.bf16.msra.mxu0 0
    %1123 = vmatprep.subr.bf16.mxu0 0
    %1124 = vmatpush1.bf16.msra.mxu0 0
    %1125 = vmatprep.subr.bf16.mxu0 0
    %1126 = vmatpush1.bf16.msra.mxu0 0
    %1127 = vmatprep.subr.bf16.mxu0 0
    %1128 = vmatpush1.bf16.msra.mxu0 0
    %1129 = vmatprep.subr.bf16.mxu0 0
    %1130 = vmatpush1.bf16.msra.mxu0 0
    %1131 = vmatprep.mubr.bf16.mxu0 0
    %1132 = vmatmul.mubr.bf16.gmra.mrb[0].mxu0 %v1094
    %v1133 = vpop.f32.mrb[0].mxu0
    %v1134 = vadd.f32 0.0, %v1133
    %v1135 = vpop.f32.mrb[0].mxu0
    %v1136 = vpop.f32.mrb[0].mxu0
    %v1137 = vpop.f32.mrb[0].mxu0
    %1138 = vdwg.mxu0
    %1139 = vrot.lane.b32.xlu0 %v437, 112
    %v1140 = vpop.permute.xlu0 %1139
    %v1142 = vsel %vm438, %v1090, 0
    %v1145 = vsel %vm558, %v1140, 0
    %1147 = vmatprep.subr.bf16.mxu0 0
    %1148 = vmatpush1.bf16.msra.mxu0 %v1145
    %1149 = vmatprep.subr.bf16.mxu0 0
    %1150 = vmatpush1.bf16.msra.mxu0 0
    %1151 = vmatprep.subr.bf16.mxu0 0
    %1152 = vmatpush1.bf16.msra.mxu0 0
    %1153 = vmatprep.subr.bf16.mxu0 0
    %1154 = vmatpush1.bf16.msra.mxu0 0
    %1155 = vmatprep.subr.bf16.mxu0 0
    %1156 = vmatpush1.bf16.msra.mxu0 0
    %1157 = vmatprep.subr.bf16.mxu0 0
    %1158 = vmatpush1.bf16.msra.mxu0 0
    %1159 = vmatprep.subr.bf16.mxu0 0
    %1160 = vmatpush1.bf16.msra.mxu0 0
    %1161 = vmatprep.subr.bf16.mxu0 0
    %1162 = vmatpush1.bf16.msra.mxu0 0
    %1163 = vmatprep.subr.bf16.mxu0 0
    %1164 = vmatpush1.bf16.msra.mxu0 0
    %1165 = vmatprep.subr.bf16.mxu0 0
    %1166 = vmatpush1.bf16.msra.mxu0 0
    %1167 = vmatprep.subr.bf16.mxu0 0
    %1168 = vmatpush1.bf16.msra.mxu0 0
    %1169 = vmatprep.subr.bf16.mxu0 0
    %1170 = vmatpush1.bf16.msra.mxu0 0
    %1171 = vmatprep.subr.bf16.mxu0 0
    %1172 = vmatpush1.bf16.msra.mxu0 0
    %1173 = vmatprep.subr.bf16.mxu0 0
    %1174 = vmatpush1.bf16.msra.mxu0 0
    %1175 = vmatprep.subr.bf16.mxu0 0
    %1176 = vmatpush1.bf16.msra.mxu0 0
    %1177 = vmatprep.subr.bf16.mxu0 0
    %1178 = vmatpush1.bf16.msra.mxu0 0
    %1179 = vmatprep.mubr.bf16.mxu0 0
    %1180 = vmatmul.mubr.bf16.gmra.mrb[0].mxu0 %v1142
    %v1181 = vpop.f32.mrb[0].mxu0
    %v1182 = vadd.f32 0.0, %v1181
    %v1183 = vpop.f32.mrb[0].mxu0
    %v1184 = vpop.f32.mrb[0].mxu0
    %v1185 = vpop.f32.mrb[0].mxu0
    %1186 = vdwg.mxu0
    %v1187 = vpack.c.bf16 %v1182, %v1134
    %s1188 = scalar_lea.vmem %s5, 8
    %v1189 = vld [vmem:[%s1188] sm:$0xf]
    %v1191 = vsel %vm438, %v1187, 0
    %v1194 = vsel %vm558, %v1189, 0
    %1196 = vmatprep.subr.bf16.mxu0 0
    %1197 = vmatpush1.bf16.msra.mxu0 %v1194
    %1198 = vmatprep.subr.bf16.mxu0 0
    %1199 = vmatpush1.bf16.msra.mxu0 0
    %1200 = vmatprep.subr.bf16.mxu0 0
    %1201 = vmatpush1.bf16.msra.mxu0 0
    %1202 = vmatprep.subr.bf16.mxu0 0
    %1203 = vmatpush1.bf16.msra.mxu0 0
    %1204 = vmatprep.subr.bf16.mxu0 0
    %1205 = vmatpush1.bf16.msra.mxu0 0
    %1206 = vmatprep.subr.bf16.mxu0 0
    %1207 = vmatpush1.bf16.msra.mxu0 0
    %1208 = vmatprep.subr.bf16.mxu0 0
    %1209 = vmatpush1.bf16.msra.mxu0 0
    %1210 = vmatprep.subr.bf16.mxu0 0
    %1211 = vmatpush1.bf16.msra.mxu0 0
    %1212 = vmatprep.subr.bf16.mxu0 0
    %1213 = vmatpush1.bf16.msra.mxu0 0
    %1214 = vmatprep.subr.bf16.mxu0 0
    %1215 = vmatpush1.bf16.msra.mxu0 0
    %1216 = vmatprep.subr.bf16.mxu0 0
    %1217 = vmatpush1.bf16.msra.mxu0 0
    %1218 = vmatprep.subr.bf16.mxu0 0
    %1219 = vmatpush1.bf16.msra.mxu0 0
    %1220 = vmatprep.subr.bf16.mxu0 0
    %1221 = vmatpush1.bf16.msra.mxu0 0
    %1222 = vmatprep.subr.bf16.mxu0 0
    %1223 = vmatpush1.bf16.msra.mxu0 0
    %1224 = vmatprep.subr.bf16.mxu0 0
    %1225 = vmatpush1.bf16.msra.mxu0 0
    %1226 = vmatprep.subr.bf16.mxu0 0
    %1227 = vmatpush1.bf16.msra.mxu0 0
    %1228 = vmatprep.mubr.bf16.mxu0 0
    %1229 = vmatmul.mubr.bf16.gmra.mrb[0].mxu0 %v1191
    %v1230 = vpop.f32.mrb[0].mxu0
    %v1231 = vadd.f32 0.0, %v1230
    %v1232 = vpop.f32.mrb[0].mxu0
    %v1233 = vpop.f32.mrb[0].mxu0
    %v1234 = vadd.f32 0.0, %v1233
    %v1235 = vpop.f32.mrb[0].mxu0
    %1236 = vdwg.mxu0
    %v1237 = vadd.f32 %v961, %v1231
    %v1238 = vadd.f32 %v964, %v1234
    %1239 = vrot.lane.b32.xlu0 %v426, 104
    %v1240 = vpop.permute.xlu0 %1239
    %1241 = vrot.lane.b32.xlu0 %v431, 104
    %v1242 = vpop.permute.xlu0 %1241
    %v1244 = vsel %vm438, %v1240, 0
    %v1247 = vsel %vm438, %v1242, 0
    %1249 = vmatprep.subr.bf16.mxu0 0
    %1250 = vmatpush1.bf16.xpose.msra.mxu0 %v1247
    %1251 = vmatprep.subr.bf16.mxu0 0
    %1252 = vmatpush1.bf16.xpose.msra.mxu0 0
    %1253 = vmatprep.subr.bf16.mxu0 0
    %1254 = vmatpush1.bf16.xpose.msra.mxu0 0
    %1255 = vmatprep.subr.bf16.mxu0 0
    %1256 = vmatpush1.bf16.xpose.msra.mxu0 0
    %1257 = vmatprep.subr.bf16.mxu0 0
    %1258 = vmatpush1.bf16.xpose.msra.mxu0 0
    %1259 = vmatprep.subr.bf16.mxu0 0
    %1260 = vmatpush1.bf16.xpose.msra.mxu0 0
    %1261 = vmatprep.subr.bf16.mxu0 0
    %1262 = vmatpush1.bf16.xpose.msra.mxu0 0
    %1263 = vmatprep.subr.bf16.mxu0 0
    %1264 = vmatpush1.bf16.xpose.msra.mxu0 0
    %1265 = vmatprep.subr.bf16.mxu0 0
    %1266 = vmatpush1.bf16.xpose.msra.mxu0 0
    %1267 = vmatprep.subr.bf16.mxu0 0
    %1268 = vmatpush1.bf16.xpose.msra.mxu0 0
    %1269 = vmatprep.subr.bf16.mxu0 0
    %1270 = vmatpush1.bf16.xpose.msra.mxu0 0
    %1271 = vmatprep.subr.bf16.mxu0 0
    %1272 = vmatpush1.bf16.xpose.msra.mxu0 0
    %1273 = vmatprep.subr.bf16.mxu0 0
    %1274 = vmatpush1.bf16.xpose.msra.mxu0 0
    %1275 = vmatprep.subr.bf16.mxu0 0
    %1276 = vmatpush1.bf16.xpose.msra.mxu0 0
    %1277 = vmatprep.subr.bf16.mxu0 0
    %1278 = vmatpush1.bf16.xpose.msra.mxu0 0
    %1279 = vmatprep.subr.bf16.mxu0 0
    %1280 = vmatpush1.bf16.xpose.msra.mxu0 0
    %1281 = vmatprep.mubr.bf16.mxu0 0
    %1282 = vmatmul.mubr.bf16.gmra.mrb[0].mxu0 %v1244
    %v1283 = vpop.f32.mrb[0].mxu0
    %v1284 = vadd.f32 0.0, %v1283
    %v1285 = vpop.f32.mrb[0].mxu0
    %v1286 = vpop.f32.mrb[0].mxu0
    %v1287 = vpop.f32.mrb[0].mxu0
    %1288 = vdwg.mxu0
    %1289 = vrot.lane.b32.xlu0 %v427, 104
    %v1290 = vpop.permute.xlu0 %1289
    %1291 = vrot.lane.b32.xlu0 %v432, 104
    %v1292 = vpop.permute.xlu0 %1291
    %v1294 = vsel %vm438, %v1290, 0
    %v1297 = vsel %vm438, %v1292, 0
    %1299 = vmatprep.subr.bf16.mxu0 0
    %1300 = vmatpush1.bf16.xpose.msra.mxu0 %v1297
    %1301 = vmatprep.subr.bf16.mxu0 0
    %1302 = vmatpush1.bf16.xpose.msra.mxu0 0
    %1303 = vmatprep.subr.bf16.mxu0 0
    %1304 = vmatpush1.bf16.xpose.msra.mxu0 0
    %1305 = vmatprep.subr.bf16.mxu0 0
    %1306 = vmatpush1.bf16.xpose.msra.mxu0 0
    %1307 = vmatprep.subr.bf16.mxu0 0
    %1308 = vmatpush1.bf16.xpose.msra.mxu0 0
    %1309 = vmatprep.subr.bf16.mxu0 0
    %1310 = vmatpush1.bf16.xpose.msra.mxu0 0
    %1311 = vmatprep.subr.bf16.mxu0 0
    %1312 = vmatpush1.bf16.xpose.msra.mxu0 0
    %1313 = vmatprep.subr.bf16.mxu0 0
    %1314 = vmatpush1.bf16.xpose.msra.mxu0 0
    %1315 = vmatprep.subr.bf16.mxu0 0
    %1316 = vmatpush1.bf16.xpose.msra.mxu0 0
    %1317 = vmatprep.subr.bf16.mxu0 0
    %1318 = vmatpush1.bf16.xpose.msra.mxu0 0
    %1319 = vmatprep.subr.bf16.mxu0 0
    %1320 = vmatpush1.bf16.xpose.msra.mxu0 0
    %1321 = vmatprep.subr.bf16.mxu0 0
    %1322 = vmatpush1.bf16.xpose.msra.mxu0 0
    %1323 = vmatprep.subr.bf16.mxu0 0
    %1324 = vmatpush1.bf16.xpose.msra.mxu0 0
    %1325 = vmatprep.subr.bf16.mxu0 0
    %1326 = vmatpush1.bf16.xpose.msra.mxu0 0
    %1327 = vmatprep.subr.bf16.mxu0 0
    %1328 = vmatpush1.bf16.xpose.msra.mxu0 0
    %1329 = vmatprep.subr.bf16.mxu0 0
    %1330 = vmatpush1.bf16.xpose.msra.mxu0 0
    %1331 = vmatprep.mubr.bf16.mxu0 0
    %1332 = vmatmul.mubr.bf16.gmra.mrb[0].mxu0 %v1294
    %v1333 = vpop.f32.mrb[0].mxu0
    %v1334 = vadd.f32 0.0, %v1333
    %v1335 = vpop.f32.mrb[0].mxu0
    %v1336 = vpop.f32.mrb[0].mxu0
    %v1337 = vpop.f32.mrb[0].mxu0
    %1338 = vdwg.mxu0
    %v1339 = vsel %vm438, %v1284, -inf
    %1340 = vmax.xlane.f32.xlu0 %v1339
    %v1341 = vpop.xlane.xlu0 %1340
    %v1342 = vsel %vm438, %v1334, -inf
    %1343 = vmax.xlane.f32.xlu0 %v1342
    %v1344 = vpop.xlane.xlu0 %1343
    %v1345 = vsub.f32 %v1284, %v1341
    %v1346 = vsub.f32 %v1334, %v1344
    %v1347 = vmul.f32 %v1345, 1.442695
    %v1348 = vpow.pop %v1347
    %v1349 = vmul.f32 %v1346, 1.442695
    %v1350 = vpow.pop %v1349
    %v1351 = vsel %vm438, %v1348, 0.0
    %1352 = vadd.xlane.f32.xlu0 %v1351
    %v1353 = vpop.xlane.xlu0 %1352
    %v1354 = vsel %vm438, %v1350, 0.0
    %1355 = vadd.xlane.f32.xlu0 %v1354
    %v1356 = vpop.xlane.xlu0 %1355
    %v1357 = vrcp.pop %v1353
    %v1358 = vrcp.pop %v1356
    %v1359 = vmul.f32 %v1348, %v1357
    %v1360 = vmul.f32 %v1350, %v1358
    %v1361 = vpack.c.bf16 %v1359, %v1359
    %v1362 = vpack.c.bf16 %v1360, %v1360
    %1363 = vrot.lane.b32.xlu0 %v436, 104
    %v1364 = vpop.permute.xlu0 %1363
    %v1366 = vsel %vm438, %v1361, 0
    %v1369 = vsel %vm558, %v1364, 0
    %1371 = vmatprep.subr.bf16.mxu0 0
    %1372 = vmatpush1.bf16.msra.mxu0 %v1369
    %1373 = vmatprep.subr.bf16.mxu0 0
    %1374 = vmatpush1.bf16.msra.mxu0 0
    %1375 = vmatprep.subr.bf16.mxu0 0
    %1376 = vmatpush1.bf16.msra.mxu0 0
    %1377 = vmatprep.subr.bf16.mxu0 0
    %1378 = vmatpush1.bf16.msra.mxu0 0
    %1379 = vmatprep.subr.bf16.mxu0 0
    %1380 = vmatpush1.bf16.msra.mxu0 0
    %1381 = vmatprep.subr.bf16.mxu0 0
    %1382 = vmatpush1.bf16.msra.mxu0 0
    %1383 = vmatprep.subr.bf16.mxu0 0
    %1384 = vmatpush1.bf16.msra.mxu0 0
    %1385 = vmatprep.subr.bf16.mxu0 0
    %1386 = vmatpush1.bf16.msra.mxu0 0
    %1387 = vmatprep.subr.bf16.mxu0 0
    %1388 = vmatpush1.bf16.msra.mxu0 0
    %1389 = vmatprep.subr.bf16.mxu0 0
    %1390 = vmatpush1.bf16.msra.mxu0 0
    %1391 = vmatprep.subr.bf16.mxu0 0
    %1392 = vmatpush1.bf16.msra.mxu0 0
    %1393 = vmatprep.subr.bf16.mxu0 0
    %1394 = vmatpush1.bf16.msra.mxu0 0
    %1395 = vmatprep.subr.bf16.mxu0 0
    %1396 = vmatpush1.bf16.msra.mxu0 0
    %1397 = vmatprep.subr.bf16.mxu0 0
    %1398 = vmatpush1.bf16.msra.mxu0 0
    %1399 = vmatprep.subr.bf16.mxu0 0
    %1400 = vmatpush1.bf16.msra.mxu0 0
    %1401 = vmatprep.subr.bf16.mxu0 0
    %1402 = vmatpush1.bf16.msra.mxu0 0
    %1403 = vmatprep.mubr.bf16.mxu0 0
    %1404 = vmatmul.mubr.bf16.gmra.mrb[0].mxu0 %v1366
    %v1405 = vpop.f32.mrb[0].mxu0
    %v1406 = vadd.f32 0.0, %v1405
    %v1407 = vpop.f32.mrb[0].mxu0
    %v1408 = vpop.f32.mrb[0].mxu0
    %v1409 = vpop.f32.mrb[0].mxu0
    %1410 = vdwg.mxu0
    %1411 = vrot.lane.b32.xlu0 %v437, 104
    %v1412 = vpop.permute.xlu0 %1411
    %v1414 = vsel %vm438, %v1362, 0
    %v1417 = vsel %vm558, %v1412, 0
    %1419 = vmatprep.subr.bf16.mxu0 0
    %1420 = vmatpush1.bf16.msra.mxu0 %v1417
    %1421 = vmatprep.subr.bf16.mxu0 0
    %1422 = vmatpush1.bf16.msra.mxu0 0
    %1423 = vmatprep.subr.bf16.mxu0 0
    %1424 = vmatpush1.bf16.msra.mxu0 0
    %1425 = vmatprep.subr.bf16.mxu0 0
    %1426 = vmatpush1.bf16.msra.mxu0 0
    %1427 = vmatprep.subr.bf16.mxu0 0
    %1428 = vmatpush1.bf16.msra.mxu0 0
    %1429 = vmatprep.subr.bf16.mxu0 0
    %1430 = vmatpush1.bf16.msra.mxu0 0
    %1431 = vmatprep.subr.bf16.mxu0 0
    %1432 = vmatpush1.bf16.msra.mxu0 0
    %1433 = vmatprep.subr.bf16.mxu0 0
    %1434 = vmatpush1.bf16.msra.mxu0 0
    %1435 = vmatprep.subr.bf16.mxu0 0
    %1436 = vmatpush1.bf16.msra.mxu0 0
    %1437 = vmatprep.subr.bf16.mxu0 0
    %1438 = vmatpush1.bf16.msra.mxu0 0
    %1439 = vmatprep.subr.bf16.mxu0 0
    %1440 = vmatpush1.bf16.msra.mxu0 0
    %1441 = vmatprep.subr.bf16.mxu0 0
    %1442 = vmatpush1.bf16.msra.mxu0 0
    %1443 = vmatprep.subr.bf16.mxu0 0
    %1444 = vmatpush1.bf16.msra.mxu0 0
    %1445 = vmatprep.subr.bf16.mxu0 0
    %1446 = vmatpush1.bf16.msra.mxu0 0
    %1447 = vmatprep.subr.bf16.mxu0 0
    %1448 = vmatpush1.bf16.msra.mxu0 0
    %1449 = vmatprep.subr.bf16.mxu0 0
    %1450 = vmatpush1.bf16.msra.mxu0 0
    %1451 = vmatprep.mubr.bf16.mxu0 0
    %1452 = vmatmul.mubr.bf16.gmra.mrb[0].mxu0 %v1414
    %v1453 = vpop.f32.mrb[0].mxu0
    %v1454 = vadd.f32 0.0, %v1453
    %v1455 = vpop.f32.mrb[0].mxu0
    %v1456 = vpop.f32.mrb[0].mxu0
    %v1457 = vpop.f32.mrb[0].mxu0
    %1458 = vdwg.mxu0
    %v1459 = vpack.c.bf16 %v1454, %v1406
    %s1460 = scalar_lea.vmem %s5, 12
    %v1461 = vld [vmem:[%s1460] sm:$0xf]
    %v1463 = vsel %vm438, %v1459, 0
    %v1466 = vsel %vm558, %v1461, 0
    %1468 = vmatprep.subr.bf16.mxu0 0
    %1469 = vmatpush1.bf16.msra.mxu0 %v1466
    %1470 = vmatprep.subr.bf16.mxu0 0
    %1471 = vmatpush1.bf16.msra.mxu0 0
    %1472 = vmatprep.subr.bf16.mxu0 0
    %1473 = vmatpush1.bf16.msra.mxu0 0
    %1474 = vmatprep.subr.bf16.mxu0 0
    %1475 = vmatpush1.bf16.msra.mxu0 0
    %1476 = vmatprep.subr.bf16.mxu0 0
    %1477 = vmatpush1.bf16.msra.mxu0 0
    %1478 = vmatprep.subr.bf16.mxu0 0
    %1479 = vmatpush1.bf16.msra.mxu0 0
    %1480 = vmatprep.subr.bf16.mxu0 0
    %1481 = vmatpush1.bf16.msra.mxu0 0
    %1482 = vmatprep.subr.bf16.mxu0 0
    %1483 = vmatpush1.bf16.msra.mxu0 0
    %1484 = vmatprep.subr.bf16.mxu0 0
    %1485 = vmatpush1.bf16.msra.mxu0 0
    %1486 = vmatprep.subr.bf16.mxu0 0
    %1487 = vmatpush1.bf16.msra.mxu0 0
    %1488 = vmatprep.subr.bf16.mxu0 0
    %1489 = vmatpush1.bf16.msra.mxu0 0
    %1490 = vmatprep.subr.bf16.mxu0 0
    %1491 = vmatpush1.bf16.msra.mxu0 0
    %1492 = vmatprep.subr.bf16.mxu0 0
    %1493 = vmatpush1.bf16.msra.mxu0 0
    %1494 = vmatprep.subr.bf16.mxu0 0
    %1495 = vmatpush1.bf16.msra.mxu0 0
    %1496 = vmatprep.subr.bf16.mxu0 0
    %1497 = vmatpush1.bf16.msra.mxu0 0
    %1498 = vmatprep.subr.bf16.mxu0 0
    %1499 = vmatpush1.bf16.msra.mxu0 0
    %1500 = vmatprep.mubr.bf16.mxu0 0
    %1501 = vmatmul.mubr.bf16.gmra.mrb[0].mxu0 %v1463
    %v1502 = vpop.f32.mrb[0].mxu0
    %v1503 = vadd.f32 0.0, %v1502
    %v1504 = vpop.f32.mrb[0].mxu0
    %v1505 = vpop.f32.mrb[0].mxu0
    %v1506 = vadd.f32 0.0, %v1505
    %v1507 = vpop.f32.mrb[0].mxu0
    %1508 = vdwg.mxu0
    %v1509 = vadd.f32 %v1237, %v1503
    %v1510 = vadd.f32 %v1238, %v1506
    %v1511 = vadd.f32 %v112, %v1509
    %v1512 = vadd.f32 %v113, %v1510
    %v1513 = vld [vmem:[%s6] sm:$0x1]
    %v1515 = vlaneseq
    %v1516 = vshrl.u32 %v1515, 7
    %v1517 = vsub.s32 0, %v1516
    %v1518 = vrot.slane %v1513, %v1517
    %v1520 = vadd.f32 %v1511, %v1518
    %v1521 = vadd.f32 %v1512, %v1518
    %1522 = vadd.xlane.f32.xlu0 %v1520
    %v1523 = vpop.xlane.xlu0 %1522
    %1524 = vadd.xlane.f32.xlu0 %v1521
    %v1525 = vpop.xlane.xlu0 %1524
    %v1526 = vmul.f32 %v1523, 0.03125
    %v1527 = vmul.f32 %v1525, 0.03125
    %v1528 = vmul.f32 %v1520, %v1520
    %v1529 = vmul.f32 %v1521, %v1521
    %1530 = vadd.xlane.f32.xlu0 %v1528
    %v1531 = vpop.xlane.xlu0 %1530
    %1532 = vadd.xlane.f32.xlu0 %v1529
    %v1533 = vpop.xlane.xlu0 %1532
    %v1534 = vmul.f32 %v1531, 0.03125
    %v1535 = vmul.f32 %v1533, 0.03125
    %v1536 = vsub.f32 %v1520, %v1526
    %v1537 = vsub.f32 %v1521, %v1527
    %v1538 = vmul.f32 %v1526, %v1526
    %v1539 = vmul.f32 %v1527, %v1527
    %v1540 = vsub.f32 %v1534, %v1538
    %v1541 = vsub.f32 %v1535, %v1539
    %v1542 = vadd.f32 %v1540, 1e-05
    %v1543 = vadd.f32 %v1541, 1e-05
    %v1544 = vrsqrt.pop %v1542
    %v1545 = vrsqrt.pop %v1543
    %v1546 = vmul.f32 %v1536, %v1544
    %v1547 = vmul.f32 %v1537, %v1545
    %v1548 = vld [vmem:[%s7] sm:$0x1]
    %v1550 = vlaneseq
    %v1551 = vshrl.u32 %v1550, 7
    %v1552 = vsub.s32 0, %v1551
    %v1553 = vrot.slane %v1548, %v1552
    %v1555 = vmul.f32 %v1546, %v1553
    %v1556 = vmul.f32 %v1547, %v1553
    %v1557 = vld [vmem:[%s8] sm:$0x1]
    %v1559 = vlaneseq
    %v1560 = vshrl.u32 %v1559, 7
    %v1561 = vsub.s32 0, %v1560
    %v1562 = vrot.slane %v1557, %v1561
    %v1564 = vadd.f32 %v1555, %v1562
    %v1565 = vadd.f32 %v1556, %v1562
    %v1566 = vpack.c.bf16 %v1565, %v1564
    %v1567 = vld [vmem:[#allocation8] sm:$0xf]
    %v1568 = vld [vmem:[#allocation8 + $0x4] sm:$0xf]
    %v1569 = vld [vmem:[#allocation8 + $0x8] sm:$0xf]
    %v1570 = vld [vmem:[#allocation8 + $0xc] sm:$0xf]
    %v1571 = vld [vmem:[#allocation8 + $0x10] sm:$0xf]
    %v1572 = vld [vmem:[#allocation8 + $0x14] sm:$0xf]
    %v1573 = vld [vmem:[#allocation8 + $0x18] sm:$0xf]
    %v1574 = vld [vmem:[#allocation8 + $0x1c] sm:$0xf]
    %v1575 = vld [vmem:[#allocation8 + $0x20] sm:$0xf]
    %v1576 = vld [vmem:[#allocation8 + $0x24] sm:$0xf]
    %v1577 = vld [vmem:[#allocation8 + $0x28] sm:$0xf]
    %v1578 = vld [vmem:[#allocation8 + $0x2c] sm:$0xf]
    %v1579 = vld [vmem:[#allocation8 + $0x30] sm:$0xf]
    %v1580 = vld [vmem:[#allocation8 + $0x34] sm:$0xf]
    %v1581 = vld [vmem:[#allocation8 + $0x38] sm:$0xf]
    %v1582 = vld [vmem:[#allocation8 + $0x3c] sm:$0xf]
    %v1583 = vld [vmem:[%s10] sm:$0x1]
    %v1585 = vlaneseq
    %v1586 = vshrl.u32 %v1585, 7
    %v1587 = vsub.s32 0, %v1586
    %v1588 = vrot.slane %v1583, %v1587
    %v1606 = vunpack.c.l.b16 %v1567
    %v1607 = vunpack.c.l.b16 %v1568
    %v1608 = vunpack.c.l.b16 %v1569
    %v1609 = vunpack.c.l.b16 %v1570
    %v1610 = vunpack.c.l.b16 %v1571
    %v1611 = vunpack.c.l.b16 %v1572
    %v1612 = vunpack.c.l.b16 %v1573
    %v1613 = vunpack.c.l.b16 %v1574
    %v1614 = vunpack.c.l.b16 %v1575
    %v1615 = vunpack.c.l.b16 %v1576
    %v1616 = vunpack.c.l.b16 %v1577
    %v1617 = vunpack.c.l.b16 %v1578
    %v1618 = vunpack.c.l.b16 %v1579
    %v1619 = vunpack.c.l.b16 %v1580
    %v1620 = vunpack.c.l.b16 %v1581
    %v1621 = vunpack.c.l.b16 %v1582
    %v1622 = vpack.c.b16 %v1607, %v1606
    %v1623 = vpack.c.b16 %v1609, %v1608
    %v1624 = vpack.c.b16 %v1611, %v1610
    %v1625 = vpack.c.b16 %v1613, %v1612
    %v1626 = vpack.c.b16 %v1615, %v1614
    %v1627 = vpack.c.b16 %v1617, %v1616
    %v1628 = vpack.c.b16 %v1619, %v1618
    %v1629 = vpack.c.b16 %v1621, %v1620
    %1638 = vmatprep.subr.bf16.mxu0 0
    %1639 = vmatpush1.bf16.msra.mxu0 %v1622
    %1640 = vmatprep.subr.bf16.mxu0 0
    %1641 = vmatpush1.bf16.msra.mxu0 %v1623
    %1642 = vmatprep.subr.bf16.mxu0 0
    %1643 = vmatpush1.bf16.msra.mxu0 %v1624
    %1644 = vmatprep.subr.bf16.mxu0 0
    %1645 = vmatpush1.bf16.msra.mxu0 %v1625
    %1646 = vmatprep.subr.bf16.mxu0 0
    %1647 = vmatpush1.bf16.msra.mxu0 %v1626
    %1648 = vmatprep.subr.bf16.mxu0 0
    %1649 = vmatpush1.bf16.msra.mxu0 %v1627
    %1650 = vmatprep.subr.bf16.mxu0 0
    %1651 = vmatpush1.bf16.msra.mxu0 %v1628
    %1652 = vmatprep.subr.bf16.mxu0 0
    %1653 = vmatpush1.bf16.msra.mxu0 %v1629
    %1654 = vmatprep.subr.bf16.mxu0 0
    %1655 = vmatpush1.bf16.msra.mxu0 0
    %1656 = vmatprep.subr.bf16.mxu0 0
    %1657 = vmatpush1.bf16.msra.mxu0 0
    %1658 = vmatprep.subr.bf16.mxu0 0
    %1659 = vmatpush1.bf16.msra.mxu0 0
    %1660 = vmatprep.subr.bf16.mxu0 0
    %1661 = vmatpush1.bf16.msra.mxu0 0
    %1662 = vmatprep.subr.bf16.mxu0 0
    %1663 = vmatpush1.bf16.msra.mxu0 0
    %1664 = vmatprep.subr.bf16.mxu0 0
    %1665 = vmatpush1.bf16.msra.mxu0 0
    %1666 = vmatprep.subr.bf16.mxu0 0
    %1667 = vmatpush1.bf16.msra.mxu0 0
    %1668 = vmatprep.subr.bf16.mxu0 0
    %1669 = vmatpush1.bf16.msra.mxu0 0
    %1670 = vmatprep.mubr.bf16.mxu0 0
    %1671 = vmatmul.mubr.bf16.gmra.mrb[0].mxu0 %v1566
    %v1672 = vpop.f32.mrb[0].mxu0
    %v1673 = vadd.f32 %v1588, %v1672
    %v1674 = vpop.f32.mrb[0].mxu0
    %v1675 = vpop.f32.mrb[0].mxu0
    %v1676 = vadd.f32 %v1588, %v1675
    %v1677 = vpop.f32.mrb[0].mxu0
    %1678 = vdwg.mxu0
    %v1679 = vmul.f32 %v1673, 1.702
    %v1680 = vmul.f32 %v1676, 1.702
    %v1681 = vxor.u32 %v1679, 2147483648
    %v1682 = vxor.u32 %v1680, 2147483648
    %v1683 = vmul.f32 %v1681, 1.442695
    %v1684 = vpow.pop %v1683
    %v1685 = vmul.f32 %v1682, 1.442695
    %v1686 = vpow.pop %v1685
    %v1687 = vadd.f32 %v1684, 1.0
    %v1688 = vadd.f32 %v1686, 1.0
    %v1689 = vrcp.pop %v1687
    %v1690 = vmul.f32 1.0, %v1689
    %v1691 = vrcp.pop %v1688
    %v1692 = vmul.f32 1.0, %v1691
    %v1693 = vmul.f32 %v1673, %v1690
    %v1694 = vmul.f32 %v1676, %v1692
    %v1695 = vpack.c.bf16 %v1694, %v1693
    %v1696 = vld [vmem:[#allocation10] sm:$0xf]
    %v1697 = vld [vmem:[#allocation10 + $0x4] sm:$0xf]
    %v1698 = vld [vmem:[#allocation10 + $0x8] sm:$0xf]
    %v1699 = vld [vmem:[#allocation10 + $0xc] sm:$0xf]
    %v1700 = vld [vmem:[#allocation10 + $0x10] sm:$0xf]
    %v1701 = vld [vmem:[#allocation10 + $0x14] sm:$0xf]
    %v1702 = vld [vmem:[#allocation10 + $0x18] sm:$0xf]
    %v1703 = vld [vmem:[#allocation10 + $0x1c] sm:$0xf]
    %v1704 = vld [vmem:[#allocation10 + $0x20] sm:$0xf]
    %v1705 = vld [vmem:[#allocation10 + $0x24] sm:$0xf]
    %v1706 = vld [vmem:[#allocation10 + $0x28] sm:$0xf]
    %v1707 = vld [vmem:[#allocation10 + $0x2c] sm:$0xf]
    %v1708 = vld [vmem:[#allocation10 + $0x30] sm:$0xf]
    %v1709 = vld [vmem:[#allocation10 + $0x34] sm:$0xf]
    %v1710 = vld [vmem:[#allocation10 + $0x38] sm:$0xf]
    %v1711 = vld [vmem:[#allocation10 + $0x3c] sm:$0xf]
    %v1712 = vld [vmem:[%s12] sm:$0x1]
    %v1714 = vlaneseq
    %v1715 = vshrl.u32 %v1714, 7
    %v1716 = vsub.s32 0, %v1715
    %v1717 = vrot.slane %v1712, %v1716
    %v1735 = vunpack.c.l.b16 %v1696
    %v1736 = vunpack.c.l.b16 %v1697
    %v1737 = vunpack.c.l.b16 %v1698
    %v1738 = vunpack.c.l.b16 %v1699
    %v1739 = vunpack.c.l.b16 %v1700
    %v1740 = vunpack.c.l.b16 %v1701
    %v1741 = vunpack.c.l.b16 %v1702
    %v1742 = vunpack.c.l.b16 %v1703
    %v1743 = vunpack.c.l.b16 %v1704
    %v1744 = vunpack.c.l.b16 %v1705
    %v1745 = vunpack.c.l.b16 %v1706
    %v1746 = vunpack.c.l.b16 %v1707
    %v1747 = vunpack.c.l.b16 %v1708
    %v1748 = vunpack.c.l.b16 %v1709
    %v1749 = vunpack.c.l.b16 %v1710
    %v1750 = vunpack.c.l.b16 %v1711
    %v1751 = vpack.c.b16 %v1736, %v1735
    %v1752 = vpack.c.b16 %v1738, %v1737
    %v1753 = vpack.c.b16 %v1740, %v1739
    %v1754 = vpack.c.b16 %v1742, %v1741
    %v1755 = vpack.c.b16 %v1744, %v1743
    %v1756 = vpack.c.b16 %v1746, %v1745
    %v1757 = vpack.c.b16 %v1748, %v1747
    %v1758 = vpack.c.b16 %v1750, %v1749
    %1767 = vmatprep.subr.bf16.mxu0 0
    %1768 = vmatpush1.bf16.msra.mxu0 %v1751
    %1769 = vmatprep.subr.bf16.mxu0 0
    %1770 = vmatpush1.bf16.msra.mxu0 %v1752
    %1771 = vmatprep.subr.bf16.mxu0 0
    %1772 = vmatpush1.bf16.msra.mxu0 %v1753
    %1773 = vmatprep.subr.bf16.mxu0 0
    %1774 = vmatpush1.bf16.msra.mxu0 %v1754
    %1775 = vmatprep.subr.bf16.mxu0 0
    %1776 = vmatpush1.bf16.msra.mxu0 %v1755
    %1777 = vmatprep.subr.bf16.mxu0 0
    %1778 = vmatpush1.bf16.msra.mxu0 %v1756
    %1779 = vmatprep.subr.bf16.mxu0 0
    %1780 = vmatpush1.bf16.msra.mxu0 %v1757
    %1781 = vmatprep.subr.bf16.mxu0 0
    %1782 = vmatpush1.bf16.msra.mxu0 %v1758
    %1783 = vmatprep.subr.bf16.mxu0 0
    %1784 = vmatpush1.bf16.msra.mxu0 0
    %1785 = vmatprep.subr.bf16.mxu0 0
    %1786 = vmatpush1.bf16.msra.mxu0 0
    %1787 = vmatprep.subr.bf16.mxu0 0
    %1788 = vmatpush1.bf16.msra.mxu0 0
    %1789 = vmatprep.subr.bf16.mxu0 0
    %1790 = vmatpush1.bf16.msra.mxu0 0
    %1791 = vmatprep.subr.bf16.mxu0 0
    %1792 = vmatpush1.bf16.msra.mxu0 0
    %1793 = vmatprep.subr.bf16.mxu0 0
    %1794 = vmatpush1.bf16.msra.mxu0 0
    %1795 = vmatprep.subr.bf16.mxu0 0
    %1796 = vmatpush1.bf16.msra.mxu0 0
    %1797 = vmatprep.subr.bf16.mxu0 0
    %1798 = vmatpush1.bf16.msra.mxu0 0
    %1799 = vmatprep.mubr.bf16.mxu0 0
    %1800 = vmatmul.mubr.bf16.gmra.mrb[0].mxu0 %v1695
    %v1801 = vpop.f32.mrb[0].mxu0
    %v1802 = vadd.f32 %v1717, %v1801
    %v1803 = vpop.f32.mrb[0].mxu0
    %v1804 = vpop.f32.mrb[0].mxu0
    %v1805 = vadd.f32 %v1717, %v1804
    %v1806 = vpop.f32.mrb[0].mxu0
    %1807 = vdwg.mxu0
    %v1808 = vadd.f32 %v1520, %v1802
    %v1809 = vadd.f32 %v1521, %v1805
    %1810 = vst [vmem:[#allocation11] sm:$0xff] %v1808
    %1811 = vst [vmem:[#allocation11 + $0x8] sm:$0xff] %v1809
    // Predicated region
    $region74: #{tpu_custom_call.1} parent=1 // pred_check
      _
    $region75: #{tpu_custom_call.1} parent=1 // pred_check_branch
      %1813 = sbr.rel (0) target = $region77
    $region76: #{tpu_custom_call.1} parent=1 // pred_region
      %s1815 = ssub.s32 256, 256
      %1816 = vsyncadd [#allocation4], %s1815
      %s1817 = sshll.u32 [#allocation11], 4
      %s1818 = int_to_ptr.vmem [resolvable:$true] %s1817
      %1823 = dma.vmem_to_hbm [thread:$0]  %s1818, 256, %s13, [#allocation4], 128, 128, 8
    $region77: #{tpu_custom_call.1} parent=1 // pred_fallthru
      _
    // Predicated region
    $region78: #{tpu_custom_call.1} parent=1 // pred_check
      _
    $region79: #{tpu_custom_call.1} parent=1 // pred_check_branch
      %1825 = sbr.rel (0) target = $region81
    $region80: #{tpu_custom_call.1} parent=1 // pred_region
      %1826 = dma.done [#allocation4], 256
    $region81: #{tpu_custom_call.1} parent=1 // pred_fallthru
      _
    %1827 = vsyncpa [#allocation3], 1
    %1828 = vsyncpa [#allocation6], 1
    %1829 = vsyncpa [#allocation9], 1
    %1830 = vsyncpa [#allocation4], 1

</llo_original>
